<compile_context>
chip_gen: v6e
topology: v6e:2x2x1
jax: 0.10.0
libtpu: 0.0.40
codegen_flags: <defaults>
</compile_context>

<pallas_src>
import jax
import jax.numpy as jnp
from jax.experimental import pallas as pl
from jax.experimental.pallas import tpu as pltpu

LANE = 128   # lane-tile width used for padded gate scores / padded logits / padded hidden dims
TB = 8       # batch tile (sublane-aligned)


# ----------------------------- Pallas kernel --------------------------------

def multimodal_kernel(
    video_ref,   # [TB*F, Dv]  bf16, batch-major (row = b*F + f)
    audio_ref,   # [TB*T, Da]  bf16, batch-major
    temb_ref,    # [TB*S, E]   bf16, batch-major token embeddings
    pv_ref,      # [TB, TB*F]  f32 pooling matrix (1/F at (i, i*F+f))
    pa_ref,      # [TB, TB*T]  f32 pooling matrix (1/T at (i, i*T+t))
    ptm_ref,     # [TB, TB*S]  f32 pooling matrix with the attention mask folded in
    wv_ref, bv_ref,          # video linear   [Dv, Hp] bf16, [1, Hp] f32
    wa_ref, ba_ref,          # audio linear   [Da, Hp] bf16, [1, Hp] f32
    wt_ref, bt_ref,          # text  linear   [E,  Hp] bf16, [1, Hp] f32
    wg_ref, bg_ref,          # fusion gate    [3*Hp, LANE] bf16 (cols>=3 zero), [1, LANE] f32 (cols>=3 = -1e30)
    wp_ref, bp_ref,          # fusion proj    [Hp, Hp] bf16, [1, Hp] f32
    w1_ref, b1_ref,          # classifier 1   [Hp, H2p] bf16, [1, H2p] f32
    w2_ref, b2_ref,          # classifier 2   [H2p, LANE] bf16 (cols>=C zero), [1, LANE] f32
    out_ref,     # [TB, 2*LANE] f32: lanes 0..127 padded logits, 128..255 padded gate weights
):
    f32 = jnp.float32
    bf16 = jnp.bfloat16

    # ---- Video encoder: one bf16 MXU matmul + ReLU, mean over frames as a pool matmul ----
    hv = jnp.dot(video_ref[...], wv_ref[...], preferred_element_type=f32) + bv_ref[...]
    hv = jnp.maximum(hv, 0.0)                                            # [TB*F, Hp] f32
    v_feat = jnp.dot(pv_ref[...], hv, preferred_element_type=f32)        # [TB, Hp]  (mean folded into pv)

    # ---- Audio encoder ----
    ha = jnp.dot(audio_ref[...], wa_ref[...], preferred_element_type=f32) + ba_ref[...]
    ha = jnp.maximum(ha, 0.0)                                            # [TB*T, Hp]
    a_feat = jnp.dot(pa_ref[...], ha, preferred_element_type=f32)        # [TB, Hp]

    # ---- Text encoder: masked mean; the mask is folded into the pooling matrix ----
    ht = jnp.dot(temb_ref[...], wt_ref[...], preferred_element_type=f32) + bt_ref[...]
    ht = jnp.maximum(ht, 0.0)                                            # [TB*S, Hp]
    t_sum = jnp.dot(ptm_ref[...], ht, preferred_element_type=f32)        # [TB, Hp]
    msum = jnp.sum(ptm_ref[...], axis=-1, keepdims=True)                 # [TB, 1]  = sum of mask per row
    inv_msum = pl.reciprocal(jnp.maximum(msum, 1e-9), approx=True)       # clamp: all-zero mask rows safe
    t_feat = t_sum * inv_msum                                            # [TB, Hp]

    # ---- Adaptive fusion gate: single dot against pre-padded gate weights.
    # Padded lanes carry a -1e30 bias so the 128-lane softmax equals the 3-way softmax. ----
    cat = jnp.concatenate([v_feat, a_feat, t_feat], axis=-1).astype(bf16)      # [TB, 3*Hp]
    scores = jnp.dot(cat, wg_ref[...], preferred_element_type=f32) + bg_ref[...]  # [TB, LANE]
    smax = jnp.max(scores, axis=-1, keepdims=True)
    sexp = jnp.exp(scores - smax)
    w = sexp / jnp.sum(sexp, axis=-1, keepdims=True)                     # exact divide: weights sum to 1

    fused = w[:, 0:1] * v_feat + w[:, 1:2] * a_feat + w[:, 2:3] * t_feat  # [TB, Hp]
    fused = jnp.dot(fused.astype(bf16), wp_ref[...], preferred_element_type=f32) + bp_ref[...]
    fused = jnp.maximum(fused, 0.0)

    # ---- Classifier head (w2/b2 pre-padded -> lane-dense logits straight off the MXU) ----
    h = jnp.dot(fused.astype(bf16), w1_ref[...], preferred_element_type=f32) + b1_ref[...]
    h = jnp.maximum(h, 0.0)                                              # [TB, H2p]
    logits = jnp.dot(h.astype(bf16), w2_ref[...], preferred_element_type=f32) + b2_ref[...]  # [TB, LANE]

    # Single contiguous lane-dense store per grid step (friendly to v5e's single vst slot).
    out_ref[...] = jnp.concatenate([logits, w], axis=-1)                 # [TB, 2*LANE]


# ----------------------------- host-side wrapper -----------------------------

def _round_up(x, m):
    return ((x + m - 1) // m) * m


def multimodal_forward(video, audio, text_input_ids, text_attention_mask, params):
    """video: [B, F, C, Hh, Ww]; audio: [B, T, n_mfcc];
       text_input_ids: [B, S] int32; text_attention_mask: [B, S]."""
    f32, bf16 = jnp.float32, jnp.bfloat16

    B, F, C, Hh, Ww = video.shape
    Dv = C * Hh * Ww
    T, Da = audio.shape[1], audio.shape[2]
    S = text_input_ids.shape[1]
    E = params["emb_table"].shape[1]
    H = params["wv"].shape[1]
    H2 = params["w1"].shape[1]
    num_classes = params["w2"].shape[1]

    Hp = _round_up(H, LANE)      # lane-padded hidden
    H2p = _round_up(H2, LANE)    # lane-padded hidden//2
    B_pad = _round_up(B, TB)     # sublane-aligned batch
    pad_b = B_pad - B
    nb = B_pad // TB

    # --- activations: batch-major, zero-pad batch, collapse leading dims (row-major reshapes
    #     only -- no host transposes), cast to bf16 for the MXU ---
    video_flat = jnp.pad(video.reshape(B, F, Dv).astype(f32),
                         ((0, pad_b), (0, 0), (0, 0))).reshape(B_pad * F, Dv).astype(bf16)
    audio_flat = jnp.pad(audio.astype(f32),
                         ((0, pad_b), (0, 0), (0, 0))).reshape(B_pad * T, Da).astype(bf16)
    # TODO(synk): move this gather in-kernel (PrefetchScalarGridSpec scalar prefetch of
    # text_input_ids + Element-indexed BlockSpec / manual DMA gather against emb_table in pl.ANY)
    # to avoid materializing temb [B,S,E] in HBM for long sequences.
    temb = jnp.take(params["emb_table"], text_input_ids, axis=0)          # [B, S, E]
    temb_flat = jnp.pad(temb, ((0, pad_b), (0, 0), (0, 0))).reshape(B_pad * S, E).astype(bf16)

    # --- pooling matrices: pooling rides the MXU (bounded code size for any F/T/S);
    #     the text pooling matrix has the attention mask folded in (masked sum = one matmul) ---
    rows = jnp.arange(TB, dtype=jnp.int32)[:, None]
    pv = ((jnp.arange(TB * F)[None, :] // F) == rows).astype(f32) / F     # [TB, TB*F]
    pa = ((jnp.arange(TB * T)[None, :] // T) == rows).astype(f32) / T     # [TB, TB*T]
    mask_pad = jnp.pad(text_attention_mask.astype(f32), ((0, pad_b), (0, 0)))       # [B_pad, S]
    onehot = (jnp.arange(B_pad)[:, None] % TB == jnp.arange(TB)[None, :]).astype(f32)  # [B_pad, TB]
    pt_mask = (onehot[:, :, None] * mask_pad[:, None, :]).reshape(B_pad, TB * S)        # [B_pad, TB*S]

    # --- weight padding (pure zero-padding / softmax-neutral bias padding; semantics exact) ---
    def pad2(w, r, c, val=0.0):
        return jnp.pad(w, ((0, r - w.shape[0]), (0, c - w.shape[1])), constant_values=val)

    wv = pad2(params["wv"], Dv, Hp).astype(bf16); bv = pad2(params["bv"], 1, Hp)
    wa = pad2(params["wa"], Da, Hp).astype(bf16); ba = pad2(params["ba"], 1, Hp)
    wt = pad2(params["wt"], E, Hp).astype(bf16);  bt = pad2(params["bt"], 1, Hp)

    wg = params["wg"]                                                     # [3H, 3]
    wg_pad = jnp.zeros((3 * Hp, LANE), f32)
    for m in range(3):
        wg_pad = wg_pad.at[m * Hp:m * Hp + H, 0:3].set(wg[m * H:(m + 1) * H, :])
    wg_pad = wg_pad.astype(bf16)
    bg_pad = jnp.pad(params["bg"], ((0, 0), (0, LANE - 3)), constant_values=-1e30)

    wp = pad2(params["wp"], Hp, Hp).astype(bf16);   bp = pad2(params["bp"], 1, Hp)
    w1 = pad2(params["w1"], Hp, H2p).astype(bf16);  b1 = pad2(params["b1"], 1, H2p)
    w2 = pad2(params["w2"], H2p, LANE).astype(bf16); b2 = pad2(params["b2"], 1, LANE)

    operands = (video_flat, audio_flat, temb_flat, pv, pa, pt_mask,
                wv, bv, wa, ba, wt, bt, wg_pad, bg_pad, wp, bp, w1, b1, w2, b2)

    def tile_spec(shape):   # per-batch-tile input
        return pl.BlockSpec(shape, lambda b: (b, 0))

    def full_spec(arr):     # grid-invariant weight / pooling matrix
        return pl.BlockSpec(arr.shape, lambda b: (0, 0))

    # TODO(synk): for production video shapes (large F, Dv), add a second ("arbitrary") grid axis
    # splitting F / Dv with a VMEM accumulator + pl.when init/finalize, and re-derive the batch /
    # frame tile sizes against the per-generation VMEM budget (64 MiB on v7x vs 128 MiB v5e/v6e).
    in_specs = [
        tile_spec((TB * F, Dv)),
        tile_spec((TB * T, Da)),
        tile_spec((TB * S, E)),
        full_spec(pv),
        full_spec(pa),
        tile_spec((TB, TB * S)),
    ] + [full_spec(a) for a in operands[6:]]

    packed = pl.pallas_call(
        multimodal_kernel,
        out_shape=jax.ShapeDtypeStruct((B_pad, 2 * LANE), f32),
        grid=(nb,),
        in_specs=in_specs,
        out_specs=pl.BlockSpec((TB, 2 * LANE), lambda b: (b, 0)),
        compiler_params=pltpu.CompilerParams(
            dimension_semantics=("parallel",),       # batch tiles shard across TensorCores
            vmem_limit_bytes=32 * 1024 * 1024),
    )(*operands)

    logits = packed[:B, :num_classes]
    modality_weights = packed[:B, LANE:LANE + 3]
    return logits, modality_weights


# ----------------------------- parameter init -------------------------------

def xavier_uniform(key, shape):
    fan_in, fan_out = shape
    limit = (6.0 / (fan_in + fan_out)) ** 0.5
    return jax.random.uniform(key, shape, jnp.float32, -limit, limit)


def init_params(key, *, dv, da, emb_dim, vocab, hidden, num_classes):
    ks = jax.random.split(key, 9)
    h2 = hidden // 2
    return {
        "emb_table": 0.02 * jax.random.normal(ks[0], (vocab, emb_dim), jnp.float32),
        "wv": xavier_uniform(ks[1], (dv, hidden)), "bv": jnp.zeros((1, hidden), jnp.float32),
        "wa": xavier_uniform(ks[2], (da, hidden)), "ba": jnp.zeros((1, hidden), jnp.float32),
        "wt": xavier_uniform(ks[3], (emb_dim, hidden)), "bt": jnp.zeros((1, hidden), jnp.float32),
        "wg": xavier_uniform(ks[4], (3 * hidden, 3)), "bg": jnp.zeros((1, 3), jnp.float32),
        "wp": xavier_uniform(ks[5], (hidden, hidden)), "bp": jnp.zeros((1, hidden), jnp.float32),
        "w1": xavier_uniform(ks[6], (hidden, h2)), "b1": jnp.zeros((1, h2), jnp.float32),
        "w2": xavier_uniform(ks[7], (h2, num_classes)), "b2": jnp.zeros((1, num_classes), jnp.float32),
    }


# ----------------------------------- main ------------------------------------

if __name__ == "__main__":
    # small shapes consistent with the module's forward signature
    B, F, C, Hh, Ww = 2, 4, 3, 8, 8     # video [B, frames, channels, height, width]
    T, N_MFCC = 8, 16                   # audio [B, time_steps, n_mfcc]
    S, VOCAB, EMB = 8, 100, 32          # text  [B, seq_len]
    HIDDEN, NUM_CLASSES = 32, 2

    key = jax.random.PRNGKey(0)
    k_v, k_a, k_t, k_p = jax.random.split(key, 4)

    video = jax.random.normal(k_v, (B, F, C, Hh, Ww), jnp.float32)
    audio = jax.random.normal(k_a, (B, T, N_MFCC), jnp.float32)
    text_input_ids = jax.random.randint(k_t, (B, S), 0, VOCAB, jnp.int32)
    text_attention_mask = jnp.ones((B, S), jnp.float32).at[1, S // 2:].set(0.0)

    params = init_params(k_p, dv=C * Hh * Ww, da=N_MFCC, emb_dim=EMB,
                         vocab=VOCAB, hidden=HIDDEN, num_classes=NUM_CLASSES)

    logits, modality_weights = multimodal_forward(
        video, audio, text_input_ids, text_attention_mask, params)
    jax.block_until_ready((logits, modality_weights))

    assert logits.shape == (B, NUM_CLASSES)
    assert modality_weights.shape == (B, 3)
    assert bool(jnp.all(jnp.isfinite(logits)))
    assert bool(jnp.allclose(jnp.sum(modality_weights, axis=-1), 1.0, atol=1e-3))
    # TODO(synk): sub-encoder definitions (VideoEncoder/AudioEncoder/TextEncoder/AdaptiveFusion)
    # were not provided in the spec; representative linear+ReLU+pool / softmax-gated fusion
    # semantics are implemented in their place.
    print("KERNEL_OK")
</pallas_src>

<mosaic_0001>
module attributes {stable_mosaic.version = 11 : i64} {
  func.func @multimodal_kernel(%arg0: i32, %arg1: memref<32x192xbf16, #tpu.memory_space<vmem>>, %arg2: memref<64x16xbf16, #tpu.memory_space<vmem>>, %arg3: memref<64x32xbf16, #tpu.memory_space<vmem>>, %arg4: memref<8x32xf32, #tpu.memory_space<vmem>>, %arg5: memref<8x64xf32, #tpu.memory_space<vmem>>, %arg6: memref<8x64xf32, #tpu.memory_space<vmem>>, %arg7: memref<192x128xbf16, #tpu.memory_space<vmem>>, %arg8: memref<1x128xf32, #tpu.memory_space<vmem>>, %arg9: memref<16x128xbf16, #tpu.memory_space<vmem>>, %arg10: memref<1x128xf32, #tpu.memory_space<vmem>>, %arg11: memref<32x128xbf16, #tpu.memory_space<vmem>>, %arg12: memref<1x128xf32, #tpu.memory_space<vmem>>, %arg13: memref<384x128xbf16, #tpu.memory_space<vmem>>, %arg14: memref<1x128xf32, #tpu.memory_space<vmem>>, %arg15: memref<128x128xbf16, #tpu.memory_space<vmem>>, %arg16: memref<1x128xf32, #tpu.memory_space<vmem>>, %arg17: memref<128x128xbf16, #tpu.memory_space<vmem>>, %arg18: memref<1x128xf32, #tpu.memory_space<vmem>>, %arg19: memref<128x128xbf16, #tpu.memory_space<vmem>>, %arg20: memref<1x128xf32, #tpu.memory_space<vmem>>, %arg21: memref<8x256xf32, #tpu.memory_space<vmem>>) attributes {dimension_semantics = [#tpu.dimension_semantics<parallel>], iteration_bounds = array<i64: 1>, scalar_prefetch = 0 : i64, scratch_operands = 0 : i64, tpu.core_type = #tpu.core_type<tc>, window_params = [{transform_indices = @transform_0, window_bounds = array<i64: 32, 192>}, {transform_indices = @transform_1, window_bounds = array<i64: 64, 16>}, {transform_indices = @transform_2, window_bounds = array<i64: 64, 32>}, {pipeline_mode = #tpu.pipeline_mode<synchronous>, transform_indices = @transform_3, window_bounds = array<i64: 8, 32>}, {pipeline_mode = #tpu.pipeline_mode<synchronous>, transform_indices = @transform_4, window_bounds = array<i64: 8, 64>}, {transform_indices = @transform_5, window_bounds = array<i64: 8, 64>}, {pipeline_mode = #tpu.pipeline_mode<synchronous>, transform_indices = @transform_6, window_bounds = array<i64: 192, 128>}, {pipeline_mode = #tpu.pipeline_mode<synchronous>, transform_indices = @transform_7, window_bounds = array<i64: 1, 128>}, {pipeline_mode = #tpu.pipeline_mode<synchronous>, transform_indices = @transform_8, window_bounds = array<i64: 16, 128>}, {pipeline_mode = #tpu.pipeline_mode<synchronous>, transform_indices = @transform_9, window_bounds = array<i64: 1, 128>}, {pipeline_mode = #tpu.pipeline_mode<synchronous>, transform_indices = @transform_10, window_bounds = array<i64: 32, 128>}, {pipeline_mode = #tpu.pipeline_mode<synchronous>, transform_indices = @transform_11, window_bounds = array<i64: 1, 128>}, {pipeline_mode = #tpu.pipeline_mode<synchronous>, transform_indices = @transform_12, window_bounds = array<i64: 384, 128>}, {pipeline_mode = #tpu.pipeline_mode<synchronous>, transform_indices = @transform_13, window_bounds = array<i64: 1, 128>}, {pipeline_mode = #tpu.pipeline_mode<synchronous>, transform_indices = @transform_14, window_bounds = array<i64: 128, 128>}, {pipeline_mode = #tpu.pipeline_mode<synchronous>, transform_indices = @transform_15, window_bounds = array<i64: 1, 128>}, {pipeline_mode = #tpu.pipeline_mode<synchronous>, transform_indices = @transform_16, window_bounds = array<i64: 128, 128>}, {pipeline_mode = #tpu.pipeline_mode<synchronous>, transform_indices = @transform_17, window_bounds = array<i64: 1, 128>}, {pipeline_mode = #tpu.pipeline_mode<synchronous>, transform_indices = @transform_18, window_bounds = array<i64: 128, 128>}, {pipeline_mode = #tpu.pipeline_mode<synchronous>, transform_indices = @transform_19, window_bounds = array<i64: 1, 128>}, {transform_indices = @transform_20, window_bounds = array<i64: 8, 256>}]} {
    %c0 = arith.constant 0 : index
    %c0_0 = arith.constant 0 : index
    %0 = vector.load %arg1[%c0, %c0_0] : memref<32x192xbf16, #tpu.memory_space<vmem>>, vector<32x192xbf16>
    %c0_1 = arith.constant 0 : index
    %c0_2 = arith.constant 0 : index
    %1 = vector.load %arg7[%c0_1, %c0_2] : memref<192x128xbf16, #tpu.memory_space<vmem>>, vector<192x128xbf16>
    %cst = arith.constant dense<0.000000e+00> : vector<32x128xf32>
    %2 = tpu.matmul %0, %1, %cst {dimension_numbers = #tpu.dot_dimension_numbers<[1], [0], [0], [1], [0, 0, 1, 1], [], []>} : vector<32x192xbf16>, vector<192x128xbf16>, vector<32x128xf32> -> vector<32x128xf32>
    %c0_3 = arith.constant 0 : index
    %c0_4 = arith.constant 0 : index
    %3 = vector.load %arg8[%c0_3, %c0_4] : memref<1x128xf32, #tpu.memory_space<vmem>>, vector<1x128xf32>
    %4 = vector.broadcast %3 : vector<1x128xf32> to vector<32x128xf32>
    %5 = arith.addf %2, %4 : vector<32x128xf32>
    %cst_5 = arith.constant 0.000000e+00 : f32
    %6 = vector.broadcast %cst_5 : f32 to vector<32x128xf32>
    %7 = arith.maximumf %5, %6 : vector<32x128xf32>
    %c0_6 = arith.constant 0 : index
    %c0_7 = arith.constant 0 : index
    %8 = vector.load %arg4[%c0_6, %c0_7] : memref<8x32xf32, #tpu.memory_space<vmem>>, vector<8x32xf32>
    %cst_8 = arith.constant dense<0.000000e+00> : vector<8x128xf32>
    %9 = tpu.matmul %8, %7, %cst_8 {dimension_numbers = #tpu.dot_dimension_numbers<[1], [0], [0], [1], [0, 0, 1, 1], [], []>} : vector<8x32xf32>, vector<32x128xf32>, vector<8x128xf32> -> vector<8x128xf32>
    %c0_9 = arith.constant 0 : index
    %c0_10 = arith.constant 0 : index
    %10 = vector.load %arg2[%c0_9, %c0_10] : memref<64x16xbf16, #tpu.memory_space<vmem>>, vector<64x16xbf16>
    %c0_11 = arith.constant 0 : index
    %c0_12 = arith.constant 0 : index
    %11 = vector.load %arg9[%c0_11, %c0_12] : memref<16x128xbf16, #tpu.memory_space<vmem>>, vector<16x128xbf16>
    %cst_13 = arith.constant dense<0.000000e+00> : vector<64x128xf32>
    %12 = tpu.matmul %10, %11, %cst_13 {dimension_numbers = #tpu.dot_dimension_numbers<[1], [0], [0], [1], [0, 0, 1, 1], [], []>} : vector<64x16xbf16>, vector<16x128xbf16>, vector<64x128xf32> -> vector<64x128xf32>
    %c0_14 = arith.constant 0 : index
    %c0_15 = arith.constant 0 : index
    %13 = vector.load %arg10[%c0_14, %c0_15] : memref<1x128xf32, #tpu.memory_space<vmem>>, vector<1x128xf32>
    %14 = vector.broadcast %13 : vector<1x128xf32> to vector<64x128xf32>
    %15 = arith.addf %12, %14 : vector<64x128xf32>
    %cst_16 = arith.constant 0.000000e+00 : f32
    %16 = vector.broadcast %cst_16 : f32 to vector<64x128xf32>
    %17 = arith.maximumf %15, %16 : vector<64x128xf32>
    %c0_17 = arith.constant 0 : index
    %c0_18 = arith.constant 0 : index
    %18 = vector.load %arg5[%c0_17, %c0_18] : memref<8x64xf32, #tpu.memory_space<vmem>>, vector<8x64xf32>
    %cst_19 = arith.constant dense<0.000000e+00> : vector<8x128xf32>
    %19 = tpu.matmul %18, %17, %cst_19 {dimension_numbers = #tpu.dot_dimension_numbers<[1], [0], [0], [1], [0, 0, 1, 1], [], []>} : vector<8x64xf32>, vector<64x128xf32>, vector<8x128xf32> -> vector<8x128xf32>
    %c0_20 = arith.constant 0 : index
    %c0_21 = arith.constant 0 : index
    %20 = vector.load %arg3[%c0_20, %c0_21] : memref<64x32xbf16, #tpu.memory_space<vmem>>, vector<64x32xbf16>
    %c0_22 = arith.constant 0 : index
    %c0_23 = arith.constant 0 : index
    %21 = vector.load %arg11[%c0_22, %c0_23] : memref<32x128xbf16, #tpu.memory_space<vmem>>, vector<32x128xbf16>
    %cst_24 = arith.constant dense<0.000000e+00> : vector<64x128xf32>
    %22 = tpu.matmul %20, %21, %cst_24 {dimension_numbers = #tpu.dot_dimension_numbers<[1], [0], [0], [1], [0, 0, 1, 1], [], []>} : vector<64x32xbf16>, vector<32x128xbf16>, vector<64x128xf32> -> vector<64x128xf32>
    %c0_25 = arith.constant 0 : index
    %c0_26 = arith.constant 0 : index
    %23 = vector.load %arg12[%c0_25, %c0_26] : memref<1x128xf32, #tpu.memory_space<vmem>>, vector<1x128xf32>
    %24 = vector.broadcast %23 : vector<1x128xf32> to vector<64x128xf32>
    %25 = arith.addf %22, %24 : vector<64x128xf32>
    %cst_27 = arith.constant 0.000000e+00 : f32
    %26 = vector.broadcast %cst_27 : f32 to vector<64x128xf32>
    %27 = arith.maximumf %25, %26 : vector<64x128xf32>
    %c0_28 = arith.constant 0 : index
    %c0_29 = arith.constant 0 : index
    %28 = vector.load %arg6[%c0_28, %c0_29] : memref<8x64xf32, #tpu.memory_space<vmem>>, vector<8x64xf32>
    %cst_30 = arith.constant dense<0.000000e+00> : vector<8x128xf32>
    %29 = tpu.matmul %28, %27, %cst_30 {dimension_numbers = #tpu.dot_dimension_numbers<[1], [0], [0], [1], [0, 0, 1, 1], [], []>} : vector<8x64xf32>, vector<64x128xf32>, vector<8x128xf32> -> vector<8x128xf32>
    %c0_31 = arith.constant 0 : index
    %c0_32 = arith.constant 0 : index
    %30 = vector.load %arg6[%c0_31, %c0_32] : memref<8x64xf32, #tpu.memory_space<vmem>>, vector<8x64xf32>
    %cst_33 = arith.constant dense<0.000000e+00> : vector<8xf32>
    %31 = vector.multi_reduction <add>, %30, %cst_33 [1] : vector<8x64xf32> to vector<8xf32>
    %32 = vector.shape_cast %31 : vector<8xf32> to vector<8x1xf32>
    %cst_34 = arith.constant 9.99999971E-10 : f32
    %33 = vector.broadcast %cst_34 : f32 to vector<8x1xf32>
    %34 = arith.maximumf %32, %33 : vector<8x1xf32>
    %35 = tpu.reciprocal %34 {approx = true} : vector<8x1xf32> -> vector<8x1xf32>
    %36 = vector.broadcast %35 : vector<8x1xf32> to vector<8x128xf32>
    %37 = arith.mulf %29, %36 : vector<8x128xf32>
    %38 = tpu.concatenate %9, %19, %37 in 1 : vector<8x128xf32>, vector<8x128xf32>, vector<8x128xf32> -> vector<8x384xf32>
    %39 = arith.truncf %38 : vector<8x384xf32> to vector<8x384xbf16>
    %c0_35 = arith.constant 0 : index
    %c0_36 = arith.constant 0 : index
    %40 = vector.load %arg13[%c0_35, %c0_36] : memref<384x128xbf16, #tpu.memory_space<vmem>>, vector<384x128xbf16>
    %cst_37 = arith.constant dense<0.000000e+00> : vector<8x128xf32>
    %41 = tpu.matmul %39, %40, %cst_37 {dimension_numbers = #tpu.dot_dimension_numbers<[1], [0], [0], [1], [0, 0, 1, 1], [], []>} : vector<8x384xbf16>, vector<384x128xbf16>, vector<8x128xf32> -> vector<8x128xf32>
    %c0_38 = arith.constant 0 : index
    %c0_39 = arith.constant 0 : index
    %42 = vector.load %arg14[%c0_38, %c0_39] : memref<1x128xf32, #tpu.memory_space<vmem>>, vector<1x128xf32>
    %43 = vector.broadcast %42 : vector<1x128xf32> to vector<8x128xf32>
    %44 = arith.addf %41, %43 : vector<8x128xf32>
    %cst_40 = arith.constant dense<0xFF800000> : vector<8xf32>
    %45 = vector.multi_reduction <maximumf>, %44, %cst_40 [1] : vector<8x128xf32> to vector<8xf32>
    %46 = vector.shape_cast %45 : vector<8xf32> to vector<8x1xf32>
    %47 = vector.broadcast %46 : vector<8x1xf32> to vector<8x128xf32>
    %48 = arith.subf %44, %47 : vector<8x128xf32>
    %49 = math.exp %48 : vector<8x128xf32>
    %cst_41 = arith.constant dense<0.000000e+00> : vector<8xf32>
    %50 = vector.multi_reduction <add>, %49, %cst_41 [1] : vector<8x128xf32> to vector<8xf32>
    %51 = vector.shape_cast %50 : vector<8xf32> to vector<8x1xf32>
    %52 = vector.broadcast %51 : vector<8x1xf32> to vector<8x128xf32>
    %53 = arith.divf %49, %52 : vector<8x128xf32>
    %54 = vector.extract_strided_slice %53 {offsets = [0, 0], sizes = [8, 1], strides = [1, 1]} : vector<8x128xf32> to vector<8x1xf32>
    %55 = vector.broadcast %54 : vector<8x1xf32> to vector<8x128xf32>
    %56 = arith.mulf %55, %9 : vector<8x128xf32>
    %57 = vector.extract_strided_slice %53 {offsets = [0, 1], sizes = [8, 1], strides = [1, 1]} : vector<8x128xf32> to vector<8x1xf32>
    %58 = vector.broadcast %57 : vector<8x1xf32> to vector<8x128xf32>
    %59 = arith.mulf %58, %19 : vector<8x128xf32>
    %60 = arith.addf %56, %59 : vector<8x128xf32>
    %61 = vector.extract_strided_slice %53 {offsets = [0, 2], sizes = [8, 1], strides = [1, 1]} : vector<8x128xf32> to vector<8x1xf32>
    %62 = vector.broadcast %61 : vector<8x1xf32> to vector<8x128xf32>
    %63 = arith.mulf %62, %37 : vector<8x128xf32>
    %64 = arith.addf %60, %63 : vector<8x128xf32>
    %65 = arith.truncf %64 : vector<8x128xf32> to vector<8x128xbf16>
    %c0_42 = arith.constant 0 : index
    %c0_43 = arith.constant 0 : index
    %66 = vector.load %arg15[%c0_42, %c0_43] : memref<128x128xbf16, #tpu.memory_space<vmem>>, vector<128x128xbf16>
    %cst_44 = arith.constant dense<0.000000e+00> : vector<8x128xf32>
    %67 = tpu.matmul %65, %66, %cst_44 {dimension_numbers = #tpu.dot_dimension_numbers<[1], [0], [0], [1], [0, 0, 1, 1], [], []>} : vector<8x128xbf16>, vector<128x128xbf16>, vector<8x128xf32> -> vector<8x128xf32>
    %c0_45 = arith.constant 0 : index
    %c0_46 = arith.constant 0 : index
    %68 = vector.load %arg16[%c0_45, %c0_46] : memref<1x128xf32, #tpu.memory_space<vmem>>, vector<1x128xf32>
    %69 = vector.broadcast %68 : vector<1x128xf32> to vector<8x128xf32>
    %70 = arith.addf %67, %69 : vector<8x128xf32>
    %cst_47 = arith.constant 0.000000e+00 : f32
    %71 = vector.broadcast %cst_47 : f32 to vector<8x128xf32>
    %72 = arith.maximumf %70, %71 : vector<8x128xf32>
    %73 = arith.truncf %72 : vector<8x128xf32> to vector<8x128xbf16>
    %c0_48 = arith.constant 0 : index
    %c0_49 = arith.constant 0 : index
    %74 = vector.load %arg17[%c0_48, %c0_49] : memref<128x128xbf16, #tpu.memory_space<vmem>>, vector<128x128xbf16>
    %cst_50 = arith.constant dense<0.000000e+00> : vector<8x128xf32>
    %75 = tpu.matmul %73, %74, %cst_50 {dimension_numbers = #tpu.dot_dimension_numbers<[1], [0], [0], [1], [0, 0, 1, 1], [], []>} : vector<8x128xbf16>, vector<128x128xbf16>, vector<8x128xf32> -> vector<8x128xf32>
    %c0_51 = arith.constant 0 : index
    %c0_52 = arith.constant 0 : index
    %76 = vector.load %arg18[%c0_51, %c0_52] : memref<1x128xf32, #tpu.memory_space<vmem>>, vector<1x128xf32>
    %77 = vector.broadcast %76 : vector<1x128xf32> to vector<8x128xf32>
    %78 = arith.addf %75, %77 : vector<8x128xf32>
    %cst_53 = arith.constant 0.000000e+00 : f32
    %79 = vector.broadcast %cst_53 : f32 to vector<8x128xf32>
    %80 = arith.maximumf %78, %79 : vector<8x128xf32>
    %81 = arith.truncf %80 : vector<8x128xf32> to vector<8x128xbf16>
    %c0_54 = arith.constant 0 : index
    %c0_55 = arith.constant 0 : index
    %82 = vector.load %arg19[%c0_54, %c0_55] : memref<128x128xbf16, #tpu.memory_space<vmem>>, vector<128x128xbf16>
    %cst_56 = arith.constant dense<0.000000e+00> : vector<8x128xf32>
    %83 = tpu.matmul %81, %82, %cst_56 {dimension_numbers = #tpu.dot_dimension_numbers<[1], [0], [0], [1], [0, 0, 1, 1], [], []>} : vector<8x128xbf16>, vector<128x128xbf16>, vector<8x128xf32> -> vector<8x128xf32>
    %c0_57 = arith.constant 0 : index
    %c0_58 = arith.constant 0 : index
    %84 = vector.load %arg20[%c0_57, %c0_58] : memref<1x128xf32, #tpu.memory_space<vmem>>, vector<1x128xf32>
    %85 = vector.broadcast %84 : vector<1x128xf32> to vector<8x128xf32>
    %86 = arith.addf %83, %85 : vector<8x128xf32>
    %87 = tpu.concatenate %86, %53 in 1 : vector<8x128xf32>, vector<8x128xf32> -> vector<8x256xf32>
    %c0_59 = arith.constant 0 : index
    %c0_60 = arith.constant 0 : index
    %88 = vector.load %arg21[%c0_59, %c0_60] : memref<8x256xf32, #tpu.memory_space<vmem>>, vector<8x256xf32>
    tpu.vector_store %arg21[%c0_59, %c0_60], %87 {strides = array<i32>} : memref<8x256xf32, #tpu.memory_space<vmem>>, vector<8x256xf32>,
    return
  }
  func.func @transform_0(%arg0: i32) -> (i32, i32) {
    %c0_i32 = arith.constant 0 : i32
    %c0_i32_0 = arith.constant 0 : i32
    return %arg0, %c0_i32 : i32, i32
  }
  func.func @transform_1(%arg0: i32) -> (i32, i32) {
    %c0_i32 = arith.constant 0 : i32
    %c0_i32_0 = arith.constant 0 : i32
    return %arg0, %c0_i32 : i32, i32
  }
  func.func @transform_2(%arg0: i32) -> (i32, i32) {
    %c0_i32 = arith.constant 0 : i32
    %c0_i32_0 = arith.constant 0 : i32
    return %arg0, %c0_i32 : i32, i32
  }
  func.func @transform_3(%arg0: i32) -> (i32, i32) {
    %c0_i32 = arith.constant 0 : i32
    %c0_i32_0 = arith.constant 0 : i32
    %c0_i32_1 = arith.constant 0 : i32
    return %c0_i32, %c0_i32_0 : i32, i32
  }
  func.func @transform_4(%arg0: i32) -> (i32, i32) {
    %c0_i32 = arith.constant 0 : i32
    %c0_i32_0 = arith.constant 0 : i32
    %c0_i32_1 = arith.constant 0 : i32
    return %c0_i32, %c0_i32_0 : i32, i32
  }
  func.func @transform_5(%arg0: i32) -> (i32, i32) {
    %c0_i32 = arith.constant 0 : i32
    %c0_i32_0 = arith.constant 0 : i32
    return %arg0, %c0_i32 : i32, i32
  }
  func.func @transform_6(%arg0: i32) -> (i32, i32) {
    %c0_i32 = arith.constant 0 : i32
    %c0_i32_0 = arith.constant 0 : i32
    %c0_i32_1 = arith.constant 0 : i32
    return %c0_i32, %c0_i32_0 : i32, i32
  }
  func.func @transform_7(%arg0: i32) -> (i32, i32) {
    %c0_i32 = arith.constant 0 : i32
    %c0_i32_0 = arith.constant 0 : i32
    %c0_i32_1 = arith.constant 0 : i32
    return %c0_i32, %c0_i32_0 : i32, i32
  }
  func.func @transform_8(%arg0: i32) -> (i32, i32) {
    %c0_i32 = arith.constant 0 : i32
    %c0_i32_0 = arith.constant 0 : i32
    %c0_i32_1 = arith.constant 0 : i32
    return %c0_i32, %c0_i32_0 : i32, i32
  }
  func.func @transform_9(%arg0: i32) -> (i32, i32) {
    %c0_i32 = arith.constant 0 : i32
    %c0_i32_0 = arith.constant 0 : i32
    %c0_i32_1 = arith.constant 0 : i32
    return %c0_i32, %c0_i32_0 : i32, i32
  }
  func.func @transform_10(%arg0: i32) -> (i32, i32) {
    %c0_i32 = arith.constant 0 : i32
    %c0_i32_0 = arith.constant 0 : i32
    %c0_i32_1 = arith.constant 0 : i32
    return %c0_i32, %c0_i32_0 : i32, i32
  }
  func.func @transform_11(%arg0: i32) -> (i32, i32) {
    %c0_i32 = arith.constant 0 : i32
    %c0_i32_0 = arith.constant 0 : i32
    %c0_i32_1 = arith.constant 0 : i32
    return %c0_i32, %c0_i32_0 : i32, i32
  }
  func.func @transform_12(%arg0: i32) -> (i32, i32) {
    %c0_i32 = arith.constant 0 : i32
    %c0_i32_0 = arith.constant 0 : i32
    %c0_i32_1 = arith.constant 0 : i32
    return %c0_i32, %c0_i32_0 : i32, i32
  }
  func.func @transform_13(%arg0: i32) -> (i32, i32) {
    %c0_i32 = arith.constant 0 : i32
    %c0_i32_0 = arith.constant 0 : i32
    %c0_i32_1 = arith.constant 0 : i32
    return %c0_i32, %c0_i32_0 : i32, i32
  }
  func.func @transform_14(%arg0: i32) -> (i32, i32) {
    %c0_i32 = arith.constant 0 : i32
    %c0_i32_0 = arith.constant 0 : i32
    %c0_i32_1 = arith.constant 0 : i32
    return %c0_i32, %c0_i32_0 : i32, i32
  }
  func.func @transform_15(%arg0: i32) -> (i32, i32) {
    %c0_i32 = arith.constant 0 : i32
    %c0_i32_0 = arith.constant 0 : i32
    %c0_i32_1 = arith.constant 0 : i32
    return %c0_i32, %c0_i32_0 : i32, i32
  }
  func.func @transform_16(%arg0: i32) -> (i32, i32) {
    %c0_i32 = arith.constant 0 : i32
    %c0_i32_0 = arith.constant 0 : i32
    %c0_i32_1 = arith.constant 0 : i32
    return %c0_i32, %c0_i32_0 : i32, i32
  }
  func.func @transform_17(%arg0: i32) -> (i32, i32) {
    %c0_i32 = arith.constant 0 : i32
    %c0_i32_0 = arith.constant 0 : i32
    %c0_i32_1 = arith.constant 0 : i32
    return %c0_i32, %c0_i32_0 : i32, i32
  }
  func.func @transform_18(%arg0: i32) -> (i32, i32) {
    %c0_i32 = arith.constant 0 : i32
    %c0_i32_0 = arith.constant 0 : i32
    %c0_i32_1 = arith.constant 0 : i32
    return %c0_i32, %c0_i32_0 : i32, i32
  }
  func.func @transform_19(%arg0: i32) -> (i32, i32) {
    %c0_i32 = arith.constant 0 : i32
    %c0_i32_0 = arith.constant 0 : i32
    %c0_i32_1 = arith.constant 0 : i32
    return %c0_i32, %c0_i32_0 : i32, i32
  }
  func.func @transform_20(%arg0: i32) -> (i32, i32) {
    %c0_i32 = arith.constant 0 : i32
    %c0_i32_0 = arith.constant 0 : i32
    return %arg0, %c0_i32 : i32, i32
  }
}

</mosaic_0001>

<llo_original>
// kernel: tpu_custom_call.1
$region0: #{tpu_custom_call.1}
  #allocation0 [shape = 'u32[]', space=smem, size = 0x4, offset = 0x4, fixed_abs, tag = 'smem constant byte address 0x4 - core index']
  #allocation1 [shape = 'u32[144,128]{1,0:T(1,128)}', space=vmem, size = 0x12000, scoped, tag = 'internal scratch']
  %s0 = inlined_call_operand.hbm [shape: bf16[32,192], index: 0, kind: input, shape index: {}]
  %s1 = inlined_call_operand.vmem [shape: bf16[64,16], index: 1, kind: input, shape index: {}]
  %s2 = inlined_call_operand.vmem [shape: bf16[64,32], index: 2, kind: input, shape index: {}]
  %s3 = inlined_call_operand.hbm [shape: f32[8,32], index: 3, kind: input, shape index: {}]
  %s4 = inlined_call_operand.hbm [shape: f32[8,64], index: 4, kind: input, shape index: {}]
  %s5 = inlined_call_operand.hbm [shape: f32[8,64], index: 5, kind: input, shape index: {}]
  %s6 = inlined_call_operand.vmem [shape: bf16[192,128], index: 6, kind: input, shape index: {}]
  %s7 = inlined_call_operand.vmem [shape: f32[1,128], index: 7, kind: input, shape index: {}]
  %s8 = inlined_call_operand.hbm [shape: bf16[16,128], index: 8, kind: input, shape index: {}]
  %s9 = inlined_call_operand.vmem [shape: f32[1,128], index: 9, kind: input, shape index: {}]
  %s10 = inlined_call_operand.hbm [shape: bf16[32,128], index: 10, kind: input, shape index: {}]
  %s11 = inlined_call_operand.vmem [shape: f32[1,128], index: 11, kind: input, shape index: {}]
  %s12 = inlined_call_operand.hbm [shape: bf16[384,128], index: 12, kind: input, shape index: {}]
  %s13 = inlined_call_operand.vmem [shape: f32[1,128], index: 13, kind: input, shape index: {}]
  %s14 = inlined_call_operand.hbm [shape: bf16[128,128], index: 14, kind: input, shape index: {}]
  %s15 = inlined_call_operand.vmem [shape: f32[1,128], index: 15, kind: input, shape index: {}]
  %s16 = inlined_call_operand.hbm [shape: bf16[128,128], index: 16, kind: input, shape index: {}]
  %s17 = inlined_call_operand.vmem [shape: f32[1,128], index: 17, kind: input, shape index: {}]
  %s18 = inlined_call_operand.hbm [shape: bf16[128,128], index: 18, kind: input, shape index: {}]
  %s19 = inlined_call_operand.vmem [shape: f32[1,128], index: 19, kind: input, shape index: {}]
  %s20 = inlined_call_operand.hbm [shape: f32[8,256], index: 20, kind: output, shape index: {}]
  %s21 = sld [smem:[#allocation0]]
  $region130: #{tpu_custom_call.1} parent=0
    _
  %s23 = ssub.s32 1, %s21
  %s24 = scalar_select 0, %s23, %s21
  $region1: #{tpu_custom_call.1} parent=0
    #allocation2 [shape = 'u8[16384]{0}', space=vmem, size = 0x4000, scoped, tag = 'input window, operand 0, single buffered']
    #allocation3 [shape = 's32[1]{0}', space=sflag, size = 0x4, scoped, tag = 'scoped memory for tpu_custom_call.1']
    #allocation4 [shape = 's32[1]{0}', space=sflag, size = 0x4, scoped, tag = 'scoped memory for tpu_custom_call.1']
    #allocation5 [shape = 'u8[4096]{0}', space=vmem, size = 0x1000, scoped, tag = 'input window, operand 3, single buffered']
    #allocation6 [shape = 's32[1]{0}', space=sflag, size = 0x4, scoped, tag = 'scoped memory for tpu_custom_call.1']
    #allocation7 [shape = 'u8[4096]{0}', space=vmem, size = 0x1000, scoped, tag = 'input window, operand 4, single buffered']
    #allocation8 [shape = 'u8[4096]{0}', space=vmem, size = 0x1000, scoped, tag = 'input window, operand 5, single buffered']
    #allocation9 [shape = 's32[1]{0}', space=sflag, size = 0x4, scoped, tag = 'scoped memory for tpu_custom_call.1']
    #allocation10 [shape = 'u8[4096]{0}', space=vmem, size = 0x1000, scoped, tag = 'input window, operand 8, single buffered']
    #allocation11 [shape = 'u8[8192]{0}', space=vmem, size = 0x2000, scoped, tag = 'input window, operand 10, single buffered']
    #allocation12 [shape = 's32[1]{0}', space=sflag, size = 0x4, scoped, tag = 'scoped memory for tpu_custom_call.1']
    #allocation13 [shape = 'u8[98304]{0}', space=vmem, size = 0x18000, scoped, tag = 'input window, operand 12, single buffered']
    #allocation14 [shape = 'u8[32768]{0}', space=vmem, size = 0x8000, scoped, tag = 'input window, operand 14, single buffered']
    #allocation15 [shape = 's32[1]{0}', space=sflag, size = 0x4, scoped, tag = 'scoped memory for tpu_custom_call.1']
    #allocation16 [shape = 'u8[32768]{0}', space=vmem, size = 0x8000, scoped, tag = 'input window, operand 16, single buffered']
    #allocation17 [shape = 'u8[32768]{0}', space=vmem, size = 0x8000, scoped, tag = 'input window, operand 18, single buffered']
    #allocation18 [shape = 's32[1]{0}', space=sflag, size = 0x4, scoped, tag = 'scoped memory for tpu_custom_call.1']
    #allocation19 [shape = 'u8[8192]{0}', space=vmem, size = 0x2000, scoped, tag = 'output window, operand 0, single buffered']
    %25 = vsyncpa [#allocation3], 0
    %26 = vsyncpa [#allocation6], 0
    %27 = vsyncpa [#allocation9], 0
    %28 = vsyncpa [#allocation12], 0
    %29 = vsyncpa [#allocation15], 0
    %30 = vsyncpa [#allocation18], 0
    %31 = vsyncpa [#allocation4], 0
    // Predicated region
    $region2: #{tpu_custom_call.1} parent=1 // pred_check
      _
    $region3: #{tpu_custom_call.1} parent=1 // pred_check_branch
      %33 = sbr.rel (0) target = $region5
    $region4: #{tpu_custom_call.1} parent=1 // pred_region
      %s35 = ssub.s32 512, 512
      %36 = vsyncadd [#allocation3], %s35
      %s37 = sshll.u32 [#allocation2], 4
      %s38 = int_to_ptr.vmem [resolvable:$true] %s37
      %43 = dma.hbm_to_vmem [thread:$0]  %s0, 512, %s38, [#allocation3], 128, 128, 8
    $region5: #{tpu_custom_call.1} parent=1 // pred_fallthru
      _
    // Predicated region
    $region6: #{tpu_custom_call.1} parent=1 // pred_check
      _
    $region7: #{tpu_custom_call.1} parent=1 // pred_check_branch
      %45 = sbr.rel (0) target = $region9
    $region8: #{tpu_custom_call.1} parent=1 // pred_region
      _
    $region9: #{tpu_custom_call.1} parent=1 // pred_fallthru
      _
    // Predicated region
    $region10: #{tpu_custom_call.1} parent=1 // pred_check
      _
    $region11: #{tpu_custom_call.1} parent=1 // pred_check_branch
      %47 = sbr.rel (0) target = $region13
    $region12: #{tpu_custom_call.1} parent=1 // pred_region
      _
    $region13: #{tpu_custom_call.1} parent=1 // pred_fallthru
      _
    // Predicated region
    $region14: #{tpu_custom_call.1} parent=1 // pred_check
      _
    $region15: #{tpu_custom_call.1} parent=1 // pred_check_branch
      %49 = sbr.rel (0) target = $region17
    $region16: #{tpu_custom_call.1} parent=1 // pred_region
      %s51 = ssub.s32 128, 128
      %52 = vsyncadd [#allocation6], %s51
      %s54 = sshll.u32 [#allocation5], 4
      %s55 = int_to_ptr.vmem [resolvable:$true] %s54
      %57 = dma.hbm_to_vmem [thread:$0]  %s3, 128, %s55, [#allocation6]
    $region17: #{tpu_custom_call.1} parent=1 // pred_fallthru
      _
    // Predicated region
    $region18: #{tpu_custom_call.1} parent=1 // pred_check
      _
    $region19: #{tpu_custom_call.1} parent=1 // pred_check_branch
      %59 = sbr.rel (0) target = $region21
    $region20: #{tpu_custom_call.1} parent=1 // pred_region
      %s61 = ssub.s32 128, 128
      %62 = vsyncadd [#allocation6], %s61
      %s64 = sshll.u32 [#allocation7], 4
      %s65 = int_to_ptr.vmem [resolvable:$true] %s64
      %67 = dma.hbm_to_vmem [thread:$0]  %s4, 128, %s65, [#allocation6]
    $region21: #{tpu_custom_call.1} parent=1 // pred_fallthru
      _
    // Predicated region
    $region22: #{tpu_custom_call.1} parent=1 // pred_check
      _
    $region23: #{tpu_custom_call.1} parent=1 // pred_check_branch
      %69 = sbr.rel (0) target = $region25
    $region24: #{tpu_custom_call.1} parent=1 // pred_region
      %s71 = ssub.s32 128, 128
      %72 = vsyncadd [#allocation9], %s71
      %s74 = sshll.u32 [#allocation8], 4
      %s75 = int_to_ptr.vmem [resolvable:$true] %s74
      %77 = dma.hbm_to_vmem [thread:$0]  %s5, 128, %s75, [#allocation9]
    $region25: #{tpu_custom_call.1} parent=1 // pred_fallthru
      _
    // Predicated region
    $region26: #{tpu_custom_call.1} parent=1 // pred_check
      _
    $region27: #{tpu_custom_call.1} parent=1 // pred_check_branch
      %79 = sbr.rel (0) target = $region29
    $region28: #{tpu_custom_call.1} parent=1 // pred_region
      _
    $region29: #{tpu_custom_call.1} parent=1 // pred_fallthru
      _
    // Predicated region
    $region30: #{tpu_custom_call.1} parent=1 // pred_check
      _
    $region31: #{tpu_custom_call.1} parent=1 // pred_check_branch
      %81 = sbr.rel (0) target = $region33
    $region32: #{tpu_custom_call.1} parent=1 // pred_region
      _
    $region33: #{tpu_custom_call.1} parent=1 // pred_fallthru
      _
    // Predicated region
    $region34: #{tpu_custom_call.1} parent=1 // pred_check
      _
    $region35: #{tpu_custom_call.1} parent=1 // pred_check_branch
      %83 = sbr.rel (0) target = $region37
    $region36: #{tpu_custom_call.1} parent=1 // pred_region
      %s85 = ssub.s32 128, 128
      %86 = vsyncadd [#allocation9], %s85
      %s87 = sshll.u32 [#allocation10], 4
      %s88 = int_to_ptr.vmem [resolvable:$true] %s87
      %93 = dma.hbm_to_vmem [thread:$0]  %s8, 128, %s88, [#allocation9], 64, 64, 4
    $region37: #{tpu_custom_call.1} parent=1 // pred_fallthru
      _
    // Predicated region
    $region38: #{tpu_custom_call.1} parent=1 // pred_check
      _
    $region39: #{tpu_custom_call.1} parent=1 // pred_check_branch
      %95 = sbr.rel (0) target = $region41
    $region40: #{tpu_custom_call.1} parent=1 // pred_region
      _
    $region41: #{tpu_custom_call.1} parent=1 // pred_fallthru
      _
    // Predicated region
    $region42: #{tpu_custom_call.1} parent=1 // pred_check
      _
    $region43: #{tpu_custom_call.1} parent=1 // pred_check_branch
      %97 = sbr.rel (0) target = $region45
    $region44: #{tpu_custom_call.1} parent=1 // pred_region
      %s99 = ssub.s32 256, 256
      %100 = vsyncadd [#allocation12], %s99
      %s101 = sshll.u32 [#allocation11], 4
      %s102 = int_to_ptr.vmem [resolvable:$true] %s101
      %107 = dma.hbm_to_vmem [thread:$0]  %s10, 256, %s102, [#allocation12], 64, 64, 4
    $region45: #{tpu_custom_call.1} parent=1 // pred_fallthru
      _
    // Predicated region
    $region46: #{tpu_custom_call.1} parent=1 // pred_check
      _
    $region47: #{tpu_custom_call.1} parent=1 // pred_check_branch
      %109 = sbr.rel (0) target = $region49
    $region48: #{tpu_custom_call.1} parent=1 // pred_region
      _
    $region49: #{tpu_custom_call.1} parent=1 // pred_fallthru
      _
    // Predicated region
    $region50: #{tpu_custom_call.1} parent=1 // pred_check
      _
    $region51: #{tpu_custom_call.1} parent=1 // pred_check_branch
      %111 = sbr.rel (0) target = $region53
    $region52: #{tpu_custom_call.1} parent=1 // pred_region
      %s113 = ssub.s32 3072, 3072
      %114 = vsyncadd [#allocation12], %s113
      %s115 = sshll.u32 [#allocation13], 4
      %s116 = int_to_ptr.vmem [resolvable:$true] %s115
      %121 = dma.hbm_to_vmem [thread:$0]  %s12, 3072, %s116, [#allocation12], 64, 64, 4
    $region53: #{tpu_custom_call.1} parent=1 // pred_fallthru
      _
    // Predicated region
    $region54: #{tpu_custom_call.1} parent=1 // pred_check
      _
    $region55: #{tpu_custom_call.1} parent=1 // pred_check_branch
      %123 = sbr.rel (0) target = $region57
    $region56: #{tpu_custom_call.1} parent=1 // pred_region
      _
    $region57: #{tpu_custom_call.1} parent=1 // pred_fallthru
      _
    // Predicated region
    $region58: #{tpu_custom_call.1} parent=1 // pred_check
      _
    $region59: #{tpu_custom_call.1} parent=1 // pred_check_branch
      %125 = sbr.rel (0) target = $region61
    $region60: #{tpu_custom_call.1} parent=1 // pred_region
      %s127 = ssub.s32 1024, 1024
      %128 = vsyncadd [#allocation15], %s127
      %s129 = sshll.u32 [#allocation14], 4
      %s130 = int_to_ptr.vmem [resolvable:$true] %s129
      %135 = dma.hbm_to_vmem [thread:$0]  %s14, 1024, %s130, [#allocation15], 64, 64, 4
    $region61: #{tpu_custom_call.1} parent=1 // pred_fallthru
      _
    // Predicated region
    $region62: #{tpu_custom_call.1} parent=1 // pred_check
      _
    $region63: #{tpu_custom_call.1} parent=1 // pred_check_branch
      %137 = sbr.rel (0) target = $region65
    $region64: #{tpu_custom_call.1} parent=1 // pred_region
      _
    $region65: #{tpu_custom_call.1} parent=1 // pred_fallthru
      _
    // Predicated region
    $region66: #{tpu_custom_call.1} parent=1 // pred_check
      _
    $region67: #{tpu_custom_call.1} parent=1 // pred_check_branch
      %139 = sbr.rel (0) target = $region69
    $region68: #{tpu_custom_call.1} parent=1 // pred_region
      %s141 = ssub.s32 1024, 1024
      %142 = vsyncadd [#allocation15], %s141
      %s143 = sshll.u32 [#allocation16], 4
      %s144 = int_to_ptr.vmem [resolvable:$true] %s143
      %149 = dma.hbm_to_vmem [thread:$0]  %s16, 1024, %s144, [#allocation15], 64, 64, 4
    $region69: #{tpu_custom_call.1} parent=1 // pred_fallthru
      _
    // Predicated region
    $region70: #{tpu_custom_call.1} parent=1 // pred_check
      _
    $region71: #{tpu_custom_call.1} parent=1 // pred_check_branch
      %151 = sbr.rel (0) target = $region73
    $region72: #{tpu_custom_call.1} parent=1 // pred_region
      _
    $region73: #{tpu_custom_call.1} parent=1 // pred_fallthru
      _
    // Predicated region
    $region74: #{tpu_custom_call.1} parent=1 // pred_check
      _
    $region75: #{tpu_custom_call.1} parent=1 // pred_check_branch
      %153 = sbr.rel (0) target = $region77
    $region76: #{tpu_custom_call.1} parent=1 // pred_region
      %s155 = ssub.s32 1024, 1024
      %156 = vsyncadd [#allocation18], %s155
      %s157 = sshll.u32 [#allocation17], 4
      %s158 = int_to_ptr.vmem [resolvable:$true] %s157
      %163 = dma.hbm_to_vmem [thread:$0]  %s18, 1024, %s158, [#allocation18], 64, 64, 4
    $region77: #{tpu_custom_call.1} parent=1 // pred_fallthru
      _
    // Predicated region
    $region78: #{tpu_custom_call.1} parent=1 // pred_check
      _
    $region79: #{tpu_custom_call.1} parent=1 // pred_check_branch
      %165 = sbr.rel (0) target = $region81
    $region80: #{tpu_custom_call.1} parent=1 // pred_region
      _
    $region81: #{tpu_custom_call.1} parent=1 // pred_fallthru
      _
    // Predicated region
    $region82: #{tpu_custom_call.1} parent=1 // pred_check
      _
    $region83: #{tpu_custom_call.1} parent=1 // pred_check_branch
      %167 = sbr.rel (0) target = $region85
    $region84: #{tpu_custom_call.1} parent=1 // pred_region
      %168 = dma.done [#allocation3], 512
    $region85: #{tpu_custom_call.1} parent=1 // pred_fallthru
      _
    // Predicated region
    $region86: #{tpu_custom_call.1} parent=1 // pred_check
      _
    $region87: #{tpu_custom_call.1} parent=1 // pred_check_branch
      %170 = sbr.rel (0) target = $region89
    $region88: #{tpu_custom_call.1} parent=1 // pred_region
      %171 = dma.done [#allocation6], 128
    $region89: #{tpu_custom_call.1} parent=1 // pred_fallthru
      _
    // Predicated region
    $region90: #{tpu_custom_call.1} parent=1 // pred_check
      _
    $region91: #{tpu_custom_call.1} parent=1 // pred_check_branch
      %173 = sbr.rel (0) target = $region93
    $region92: #{tpu_custom_call.1} parent=1 // pred_region
      %174 = dma.done [#allocation6], 128
    $region93: #{tpu_custom_call.1} parent=1 // pred_fallthru
      _
    // Predicated region
    $region94: #{tpu_custom_call.1} parent=1 // pred_check
      _
    $region95: #{tpu_custom_call.1} parent=1 // pred_check_branch
      %176 = sbr.rel (0) target = $region97
    $region96: #{tpu_custom_call.1} parent=1 // pred_region
      %177 = dma.done [#allocation9], 128
    $region97: #{tpu_custom_call.1} parent=1 // pred_fallthru
      _
    // Predicated region
    $region98: #{tpu_custom_call.1} parent=1 // pred_check
      _
    $region99: #{tpu_custom_call.1} parent=1 // pred_check_branch
      %179 = sbr.rel (0) target = $region101
    $region100: #{tpu_custom_call.1} parent=1 // pred_region
      %180 = dma.done [#allocation9], 128
    $region101: #{tpu_custom_call.1} parent=1 // pred_fallthru
      _
    // Predicated region
    $region102: #{tpu_custom_call.1} parent=1 // pred_check
      _
    $region103: #{tpu_custom_call.1} parent=1 // pred_check_branch
      %182 = sbr.rel (0) target = $region105
    $region104: #{tpu_custom_call.1} parent=1 // pred_region
      %183 = dma.done [#allocation12], 256
    $region105: #{tpu_custom_call.1} parent=1 // pred_fallthru
      _
    // Predicated region
    $region106: #{tpu_custom_call.1} parent=1 // pred_check
      _
    $region107: #{tpu_custom_call.1} parent=1 // pred_check_branch
      %185 = sbr.rel (0) target = $region109
    $region108: #{tpu_custom_call.1} parent=1 // pred_region
      %186 = dma.done [#allocation12], 3072
    $region109: #{tpu_custom_call.1} parent=1 // pred_fallthru
      _
    // Predicated region
    $region110: #{tpu_custom_call.1} parent=1 // pred_check
      _
    $region111: #{tpu_custom_call.1} parent=1 // pred_check_branch
      %188 = sbr.rel (0) target = $region113
    $region112: #{tpu_custom_call.1} parent=1 // pred_region
      %189 = dma.done [#allocation15], 1024
    $region113: #{tpu_custom_call.1} parent=1 // pred_fallthru
      _
    // Predicated region
    $region114: #{tpu_custom_call.1} parent=1 // pred_check
      _
    $region115: #{tpu_custom_call.1} parent=1 // pred_check_branch
      %191 = sbr.rel (0) target = $region117
    $region116: #{tpu_custom_call.1} parent=1 // pred_region
      %192 = dma.done [#allocation15], 1024
    $region117: #{tpu_custom_call.1} parent=1 // pred_fallthru
      _
    // Predicated region
    $region118: #{tpu_custom_call.1} parent=1 // pred_check
      _
    $region119: #{tpu_custom_call.1} parent=1 // pred_check_branch
      %194 = sbr.rel (0) target = $region121
    $region120: #{tpu_custom_call.1} parent=1 // pred_region
      %195 = dma.done [#allocation18], 1024
    $region121: #{tpu_custom_call.1} parent=1 // pred_fallthru
      _
    %v197 = vld [vmem:[#allocation2] sm:$0xff]
    %v198 = vld [vmem:[#allocation2 + $0x8] sm:$0xff]
    %v199 = vld [vmem:[#allocation2 + $0x10] sm:$0xff]
    %v200 = vld [vmem:[#allocation2 + $0x18] sm:$0xff]
    %v201 = vld [vmem:[%s6] sm:$0xf]
    %v202 = vld [vmem:[%s6 + $0x4] sm:$0xf]
    %v203 = vld [vmem:[%s6 + $0x8] sm:$0xf]
    %v204 = vld [vmem:[%s6 + $0xc] sm:$0xf]
    %v205 = vld [vmem:[%s6 + $0x10] sm:$0xf]
    %v206 = vld [vmem:[%s6 + $0x14] sm:$0xf]
    %v207 = vld [vmem:[%s6 + $0x18] sm:$0xf]
    %v208 = vld [vmem:[%s6 + $0x1c] sm:$0xf]
    %v209 = vld [vmem:[%s6 + $0x20] sm:$0xf]
    %v210 = vld [vmem:[%s6 + $0x24] sm:$0xf]
    %v211 = vld [vmem:[%s6 + $0x28] sm:$0xf]
    %v212 = vld [vmem:[%s6 + $0x2c] sm:$0xf]
    %v213 = vld [vmem:[%s6 + $0x30] sm:$0xf]
    %v214 = vld [vmem:[%s6 + $0x34] sm:$0xf]
    %v215 = vld [vmem:[%s6 + $0x38] sm:$0xf]
    %v216 = vld [vmem:[%s6 + $0x3c] sm:$0xf]
    %v217 = vld [vmem:[%s6 + $0x40] sm:$0xf]
    %v218 = vld [vmem:[%s6 + $0x44] sm:$0xf]
    %v219 = vld [vmem:[%s6 + $0x48] sm:$0xf]
    %v220 = vld [vmem:[%s6 + $0x4c] sm:$0xf]
    %v221 = vld [vmem:[%s6 + $0x50] sm:$0xf]
    %v222 = vld [vmem:[%s6 + $0x54] sm:$0xf]
    %v223 = vld [vmem:[%s6 + $0x58] sm:$0xf]
    %v224 = vld [vmem:[%s6 + $0x5c] sm:$0xf]
    %v225 = vld [vmem:[%s7] sm:$0x1]
    %v227 = vlaneseq
    %v228 = vshrl.u32 %v227, 7
    %v229 = vsub.s32 0, %v228
    %v230 = vrot.slane %v225, %v229
    %v236 = vunpack.c.l.b16 %v197
    %v237 = vunpack.c.h.b16 %v197
    %v238 = vunpack.c.l.b16 %v198
    %v239 = vunpack.c.h.b16 %v198
    %v240 = vunpack.c.l.b16 %v199
    %v241 = vunpack.c.h.b16 %v199
    %v242 = vunpack.c.l.b16 %v200
    %v243 = vunpack.c.h.b16 %v200
    %v244 = vpack.c.b16 %v238, %v236
    %v245 = vpack.c.b16 %v239, %v237
    %v246 = vpack.c.b16 %v242, %v240
    %v247 = vpack.c.b16 %v243, %v241
    %v274 = vunpack.c.l.b16 %v201
    %v275 = vunpack.c.l.b16 %v202
    %v276 = vunpack.c.l.b16 %v203
    %v277 = vunpack.c.l.b16 %v204
    %v278 = vunpack.c.l.b16 %v205
    %v279 = vunpack.c.l.b16 %v206
    %v280 = vunpack.c.l.b16 %v207
    %v281 = vunpack.c.l.b16 %v208
    %v282 = vunpack.c.l.b16 %v209
    %v283 = vunpack.c.l.b16 %v210
    %v284 = vunpack.c.l.b16 %v211
    %v285 = vunpack.c.l.b16 %v212
    %v286 = vunpack.c.l.b16 %v213
    %v287 = vunpack.c.l.b16 %v214
    %v288 = vunpack.c.l.b16 %v215
    %v289 = vunpack.c.l.b16 %v216
    %v290 = vunpack.c.l.b16 %v217
    %v291 = vunpack.c.l.b16 %v218
    %v292 = vunpack.c.l.b16 %v219
    %v293 = vunpack.c.l.b16 %v220
    %v294 = vunpack.c.l.b16 %v221
    %v295 = vunpack.c.l.b16 %v222
    %v296 = vunpack.c.l.b16 %v223
    %v297 = vunpack.c.l.b16 %v224
    %v298 = vpack.c.b16 %v275, %v274
    %v299 = vpack.c.b16 %v277, %v276
    %v300 = vpack.c.b16 %v279, %v278
    %v301 = vpack.c.b16 %v281, %v280
    %v302 = vpack.c.b16 %v283, %v282
    %v303 = vpack.c.b16 %v285, %v284
    %v304 = vpack.c.b16 %v287, %v286
    %v305 = vpack.c.b16 %v289, %v288
    %v306 = vpack.c.b16 %v291, %v290
    %v307 = vpack.c.b16 %v293, %v292
    %v308 = vpack.c.b16 %v295, %v294
    %v309 = vpack.c.b16 %v297, %v296
    %vm322 = vcmask 523264
    %v324 = vsel %vm322, %v245, 0
    %v327 = vsel %vm322, %v247, 0
    %329 = vmatprep.subr.bf16.mxu0 0
    %330 = vmatpush1.bf16.msra.mxu0 %v305
    %331 = vmatprep.subr.bf16.mxu0 0
    %332 = vmatpush1.bf16.msra.mxu0 %v304
    %333 = vmatprep.subr.bf16.mxu0 0
    %334 = vmatpush1.bf16.msra.mxu0 %v303
    %335 = vmatprep.subr.bf16.mxu0 0
    %336 = vmatpush1.bf16.msra.mxu0 %v302
    %337 = vmatprep.subr.bf16.mxu0 0
    %338 = vmatpush1.bf16.msra.mxu0 %v301
    %339 = vmatprep.subr.bf16.mxu0 0
    %340 = vmatpush1.bf16.msra.mxu0 %v300
    %341 = vmatprep.subr.bf16.mxu0 0
    %342 = vmatpush1.bf16.msra.mxu0 %v299
    %343 = vmatprep.subr.bf16.mxu0 0
    %344 = vmatpush1.bf16.msra.mxu0 %v298
    %345 = vmatprep.subr.bf16.mxu0 0
    %346 = vmatpush2.bf16.msra.mxu0 0
    %347 = vmatprep.subr.bf16.mxu0 0
    %348 = vmatpush2.bf16.msra.mxu0 0
    %349 = vmatprep.subr.bf16.mxu0 0
    %350 = vmatpush2.bf16.msra.mxu0 0
    %351 = vmatprep.subr.bf16.mxu0 0
    %352 = vmatpush2.bf16.msra.mxu0 0
    %353 = vmatprep.subr.bf16.mxu0 0
    %354 = vmatpush2.bf16.msra.mxu0 %v309
    %355 = vmatprep.subr.bf16.mxu0 0
    %356 = vmatpush2.bf16.msra.mxu0 %v308
    %357 = vmatprep.subr.bf16.mxu0 0
    %358 = vmatpush2.bf16.msra.mxu0 %v307
    %359 = vmatprep.subr.bf16.mxu0 0
    %360 = vmatpush2.bf16.msra.mxu0 %v306
    %361 = vmatprep.mubr.bf16.mxu0 %v324
    %362 = vmatmul.mubr.bf16.gmra.mxu0 %v244
    %v363 = vpop.f32.mrf.mxu0
    %v364 = vadd.f32 %v230, %v363
    %v365 = vpop.f32.mrf.mxu0
    %v366 = vpop.f32.mrf.mxu0
    %v367 = vadd.f32 %v230, %v366
    %v368 = vpop.f32.mrf.mxu0
    %369 = vmatprep.mubr.bf16.mxu0 %v327
    %370 = vmatmul.mubr.bf16.gmra.mxu0 %v246
    %v371 = vpop.f32.mrf.mxu0
    %v372 = vadd.f32 %v230, %v371
    %v373 = vpop.f32.mrf.mxu0
    %v374 = vpop.f32.mrf.mxu0
    %v375 = vadd.f32 %v230, %v374
    %v376 = vpop.f32.mrf.mxu0
    %377 = vdwg.mxu0
    %v378 = vmax.f32 %v364, 0.0
    %v379 = vmax.f32 %v367, 0.0
    %v380 = vmax.f32 %v372, 0.0
    %v381 = vmax.f32 %v375, 0.0
    %v382 = vld [vmem:[#allocation5] sm:$0xff]
    %vm383 = vcmask 261120
    %v385 = vsel %vm383, %v382, 0
    %387 = vmatprep.subr.mxu0 0.0
    %388 = vmatpush1.msra.mxu0 0.0
    %389 = vmatprep.subr.mxu0 0.0
    %390 = vmatpush1.msra.mxu0 0.0
    %391 = vmatprep.subr.mxu0 0.0
    %392 = vmatpush1.msra.mxu0 0.0
    %393 = vmatprep.subr.mxu0 0.0
    %394 = vmatpush1.msra.mxu0 0.0
    %395 = vmatprep.subr.mxu0 0.0
    %396 = vmatpush1.msra.mxu0 0.0
    %397 = vmatprep.subr.mxu0 0.0
    %398 = vmatpush1.msra.mxu0 0.0
    %399 = vmatprep.subr.mxu0 0.0
    %400 = vmatpush1.msra.mxu0 0.0
    %401 = vmatprep.subr.mxu0 0.0
    %402 = vmatpush1.msra.mxu0 0.0
    %403 = vmatprep.subr.mxu0 0.0
    %404 = vmatpush1.msra.mxu0 0.0
    %405 = vmatprep.subr.mxu0 0.0
    %406 = vmatpush1.msra.mxu0 0.0
    %407 = vmatprep.subr.mxu0 0.0
    %408 = vmatpush1.msra.mxu0 0.0
    %409 = vmatprep.subr.mxu0 0.0
    %410 = vmatpush1.msra.mxu0 0.0
    %411 = vmatprep.subr.mxu0 0.0
    %412 = vmatpush1.msra.mxu0 %v381
    %413 = vmatprep.subr.mxu0 0.0
    %414 = vmatpush1.msra.mxu0 %v380
    %415 = vmatprep.subr.mxu0 0.0
    %416 = vmatpush1.msra.mxu0 %v379
    %417 = vmatprep.subr.mxu0 0.0
    %418 = vmatpush1.msra.mxu0 %v378
    %419 = vmatprep.subr.mxu0 0.0
    %420 = vmatpush2.msra.mxu0 0.0
    %421 = vmatprep.subr.mxu0 0.0
    %422 = vmatpush2.msra.mxu0 0.0
    %423 = vmatprep.subr.mxu0 0.0
    %424 = vmatpush2.msra.mxu0 0.0
    %425 = vmatprep.subr.mxu0 0.0
    %426 = vmatpush2.msra.mxu0 0.0
    %427 = vmatprep.subr.mxu0 0.0
    %428 = vmatpush2.msra.mxu0 0.0
    %429 = vmatprep.subr.mxu0 0.0
    %430 = vmatpush2.msra.mxu0 0.0
    %431 = vmatprep.subr.mxu0 0.0
    %432 = vmatpush2.msra.mxu0 0.0
    %433 = vmatprep.subr.mxu0 0.0
    %434 = vmatpush2.msra.mxu0 0.0
    %435 = vmatprep.subr.mxu0 0.0
    %436 = vmatpush2.msra.mxu0 0.0
    %437 = vmatprep.subr.mxu0 0.0
    %438 = vmatpush2.msra.mxu0 0.0
    %439 = vmatprep.subr.mxu0 0.0
    %440 = vmatpush2.msra.mxu0 0.0
    %441 = vmatprep.subr.mxu0 0.0
    %442 = vmatpush2.msra.mxu0 0.0
    %443 = vmatprep.subr.mxu0 0.0
    %444 = vmatpush2.msra.mxu0 0.0
    %445 = vmatprep.subr.mxu0 0.0
    %446 = vmatpush2.msra.mxu0 0.0
    %447 = vmatprep.subr.mxu0 0.0
    %448 = vmatpush2.msra.mxu0 0.0
    %449 = vmatprep.subr.mxu0 0.0
    %450 = vmatpush2.msra.mxu0 0.0
    %451 = vmatprep.mubr.f32.mxu0 0.0
    %452 = vmatmul.mubr.f32.gmra.mxu0 %v385
    %v453 = vpop.f32.mrf.mxu0
    %v454 = vadd.f32 0.0, %v453
    %v455 = vpop.f32.mrf.mxu0
    %456 = vdwg.mxu0
    %v457 = vld [vmem:[%s1] sm:$0xf]
    %v458 = vld [vmem:[%s1 + $0x4] sm:$0xf]
    %v459 = vld [vmem:[%s1 + $0x8] sm:$0xf]
    %v460 = vld [vmem:[%s1 + $0xc] sm:$0xf]
    %v461 = vld [vmem:[%s1 + $0x10] sm:$0xf]
    %v462 = vld [vmem:[%s1 + $0x14] sm:$0xf]
    %v463 = vld [vmem:[%s1 + $0x18] sm:$0xf]
    %v464 = vld [vmem:[%s1 + $0x1c] sm:$0xf]
    %v465 = vld [vmem:[#allocation10] sm:$0xf]
    %v466 = vld [vmem:[#allocation10 + $0x4] sm:$0xf]
    %v467 = vld [vmem:[%s9] sm:$0x1]
    %v469 = vlaneseq
    %v470 = vshrl.u32 %v469, 7
    %v471 = vsub.s32 0, %v470
    %v472 = vrot.slane %v467, %v471
    %v482 = vunpack.c.l.b16 %v457
    %v483 = vunpack.c.l.b16 %v458
    %v484 = vunpack.c.l.b16 %v459
    %v485 = vunpack.c.l.b16 %v460
    %v486 = vunpack.c.l.b16 %v461
    %v487 = vunpack.c.l.b16 %v462
    %v488 = vunpack.c.l.b16 %v463
    %v489 = vunpack.c.l.b16 %v464
    %v490 = vpack.c.b16 %v483, %v482
    %v491 = vpack.c.b16 %v485, %v484
    %v492 = vpack.c.b16 %v487, %v486
    %v493 = vpack.c.b16 %v489, %v488
    %v496 = vunpack.c.l.b16 %v465
    %v497 = vunpack.c.l.b16 %v466
    %v498 = vpack.c.b16 %v497, %v496
    %vm500 = vcmask 130048
    %v502 = vsel %vm500, %v490, 0
    %v505 = vsel %vm500, %v491, 0
    %v508 = vsel %vm500, %v492, 0
    %v511 = vsel %vm500, %v493, 0
    %513 = vmatprep.subr.bf16.mxu0 0
    %514 = vmatpush1.bf16.msra.mxu0 0
    %515 = vmatprep.subr.bf16.mxu0 0
    %516 = vmatpush1.bf16.msra.mxu0 0
    %517 = vmatprep.subr.bf16.mxu0 0
    %518 = vmatpush1.bf16.msra.mxu0 0
    %519 = vmatprep.subr.bf16.mxu0 0
    %520 = vmatpush1.bf16.msra.mxu0 0
    %521 = vmatprep.subr.bf16.mxu0 0
    %522 = vmatpush1.bf16.msra.mxu0 0
    %523 = vmatprep.subr.bf16.mxu0 0
    %524 = vmatpush1.bf16.msra.mxu0 0
    %525 = vmatprep.subr.bf16.mxu0 0
    %526 = vmatpush1.bf16.msra.mxu0 0
    %527 = vmatprep.subr.bf16.mxu0 0
    %528 = vmatpush1.bf16.msra.mxu0 %v498
    %529 = vmatprep.subr.bf16.mxu0 0
    %530 = vmatpush2.bf16.msra.mxu0 0
    %531 = vmatprep.subr.bf16.mxu0 0
    %532 = vmatpush2.bf16.msra.mxu0 0
    %533 = vmatprep.subr.bf16.mxu0 0
    %534 = vmatpush2.bf16.msra.mxu0 0
    %535 = vmatprep.subr.bf16.mxu0 0
    %536 = vmatpush2.bf16.msra.mxu0 0
    %537 = vmatprep.subr.bf16.mxu0 0
    %538 = vmatpush2.bf16.msra.mxu0 0
    %539 = vmatprep.subr.bf16.mxu0 0
    %540 = vmatpush2.bf16.msra.mxu0 0
    %541 = vmatprep.subr.bf16.mxu0 0
    %542 = vmatpush2.bf16.msra.mxu0 0
    %543 = vmatprep.subr.bf16.mxu0 0
    %544 = vmatpush2.bf16.msra.mxu0 0
    %545 = vmatprep.mubr.bf16.mxu0 0
    %546 = vmatmul.mubr.bf16.gmra.mxu0 %v502
    %v547 = vpop.f32.mrf.mxu0
    %v548 = vadd.f32 %v472, %v547
    %v549 = vpop.f32.mrf.mxu0
    %v550 = vpop.f32.mrf.mxu0
    %v551 = vadd.f32 %v472, %v550
    %v552 = vpop.f32.mrf.mxu0
    %553 = vmatprep.mubr.bf16.mxu0 0
    %554 = vmatmul.mubr.bf16.gmra.mxu0 %v505
    %v555 = vpop.f32.mrf.mxu0
    %v556 = vadd.f32 %v472, %v555
    %v557 = vpop.f32.mrf.mxu0
    %v558 = vpop.f32.mrf.mxu0
    %v559 = vadd.f32 %v472, %v558
    %v560 = vpop.f32.mrf.mxu0
    %561 = vmatprep.mubr.bf16.mxu0 0
    %562 = vmatmul.mubr.bf16.gmra.mxu0 %v508
    %v563 = vpop.f32.mrf.mxu0
    %v564 = vadd.f32 %v472, %v563
    %v565 = vpop.f32.mrf.mxu0
    %v566 = vpop.f32.mrf.mxu0
    %v567 = vadd.f32 %v472, %v566
    %v568 = vpop.f32.mrf.mxu0
    %569 = vmatprep.mubr.bf16.mxu0 0
    %570 = vmatmul.mubr.bf16.gmra.mxu0 %v511
    %v571 = vpop.f32.mrf.mxu0
    %v572 = vadd.f32 %v472, %v571
    %v573 = vpop.f32.mrf.mxu0
    %v574 = vpop.f32.mrf.mxu0
    %v575 = vadd.f32 %v472, %v574
    %v576 = vpop.f32.mrf.mxu0
    %577 = vdwg.mxu0
    %v578 = vmax.f32 %v548, 0.0
    %v579 = vmax.f32 %v551, 0.0
    %v580 = vmax.f32 %v556, 0.0
    %v581 = vmax.f32 %v559, 0.0
    %v582 = vmax.f32 %v564, 0.0
    %v583 = vmax.f32 %v567, 0.0
    %v584 = vmax.f32 %v572, 0.0
    %v585 = vmax.f32 %v575, 0.0
    %v586 = vld [vmem:[#allocation7] sm:$0xff]
    %v588 = vsel %vm322, %v586, 0
    %590 = vmatprep.subr.mxu0 0.0
    %591 = vmatpush1.msra.mxu0 0.0
    %592 = vmatprep.subr.mxu0 0.0
    %593 = vmatpush1.msra.mxu0 0.0
    %594 = vmatprep.subr.mxu0 0.0
    %595 = vmatpush1.msra.mxu0 0.0
    %596 = vmatprep.subr.mxu0 0.0
    %597 = vmatpush1.msra.mxu0 0.0
    %598 = vmatprep.subr.mxu0 0.0
    %599 = vmatpush1.msra.mxu0 0.0
    %600 = vmatprep.subr.mxu0 0.0
    %601 = vmatpush1.msra.mxu0 0.0
    %602 = vmatprep.subr.mxu0 0.0
    %603 = vmatpush1.msra.mxu0 0.0
    %604 = vmatprep.subr.mxu0 0.0
    %605 = vmatpush1.msra.mxu0 0.0
    %606 = vmatprep.subr.mxu0 0.0
    %607 = vmatpush1.msra.mxu0 %v585
    %608 = vmatprep.subr.mxu0 0.0
    %609 = vmatpush1.msra.mxu0 %v584
    %610 = vmatprep.subr.mxu0 0.0
    %611 = vmatpush1.msra.mxu0 %v583
    %612 = vmatprep.subr.mxu0 0.0
    %613 = vmatpush1.msra.mxu0 %v582
    %614 = vmatprep.subr.mxu0 0.0
    %615 = vmatpush1.msra.mxu0 %v581
    %616 = vmatprep.subr.mxu0 0.0
    %617 = vmatpush1.msra.mxu0 %v580
    %618 = vmatprep.subr.mxu0 0.0
    %619 = vmatpush1.msra.mxu0 %v579
    %620 = vmatprep.subr.mxu0 0.0
    %621 = vmatpush1.msra.mxu0 %v578
    %622 = vmatprep.subr.mxu0 0.0
    %623 = vmatpush2.msra.mxu0 0.0
    %624 = vmatprep.subr.mxu0 0.0
    %625 = vmatpush2.msra.mxu0 0.0
    %626 = vmatprep.subr.mxu0 0.0
    %627 = vmatpush2.msra.mxu0 0.0
    %628 = vmatprep.subr.mxu0 0.0
    %629 = vmatpush2.msra.mxu0 0.0
    %630 = vmatprep.subr.mxu0 0.0
    %631 = vmatpush2.msra.mxu0 0.0
    %632 = vmatprep.subr.mxu0 0.0
    %633 = vmatpush2.msra.mxu0 0.0
    %634 = vmatprep.subr.mxu0 0.0
    %635 = vmatpush2.msra.mxu0 0.0
    %636 = vmatprep.subr.mxu0 0.0
    %637 = vmatpush2.msra.mxu0 0.0
    %638 = vmatprep.subr.mxu0 0.0
    %639 = vmatpush2.msra.mxu0 0.0
    %640 = vmatprep.subr.mxu0 0.0
    %641 = vmatpush2.msra.mxu0 0.0
    %642 = vmatprep.subr.mxu0 0.0
    %643 = vmatpush2.msra.mxu0 0.0
    %644 = vmatprep.subr.mxu0 0.0
    %645 = vmatpush2.msra.mxu0 0.0
    %646 = vmatprep.subr.mxu0 0.0
    %647 = vmatpush2.msra.mxu0 0.0
    %648 = vmatprep.subr.mxu0 0.0
    %649 = vmatpush2.msra.mxu0 0.0
    %650 = vmatprep.subr.mxu0 0.0
    %651 = vmatpush2.msra.mxu0 0.0
    %652 = vmatprep.subr.mxu0 0.0
    %653 = vmatpush2.msra.mxu0 0.0
    %654 = vmatprep.mubr.f32.mxu0 0.0
    %655 = vmatmul.mubr.f32.gmra.mxu0 %v588
    %v656 = vpop.f32.mrf.mxu0
    %v657 = vadd.f32 0.0, %v656
    %v658 = vpop.f32.mrf.mxu0
    %659 = vdwg.mxu0
    %v660 = vld [vmem:[%s2] sm:$0xf]
    %v661 = vld [vmem:[%s2 + $0x4] sm:$0xf]
    %v662 = vld [vmem:[%s2 + $0x8] sm:$0xf]
    %v663 = vld [vmem:[%s2 + $0xc] sm:$0xf]
    %v664 = vld [vmem:[%s2 + $0x10] sm:$0xf]
    %v665 = vld [vmem:[%s2 + $0x14] sm:$0xf]
    %v666 = vld [vmem:[%s2 + $0x18] sm:$0xf]
    %v667 = vld [vmem:[%s2 + $0x1c] sm:$0xf]
    %v668 = vld [vmem:[#allocation11] sm:$0xf]
    %v669 = vld [vmem:[#allocation11 + $0x4] sm:$0xf]
    %v670 = vld [vmem:[#allocation11 + $0x8] sm:$0xf]
    %v671 = vld [vmem:[#allocation11 + $0xc] sm:$0xf]
    %v672 = vld [vmem:[%s11] sm:$0x1]
    %v674 = vlaneseq
    %v675 = vshrl.u32 %v674, 7
    %v676 = vsub.s32 0, %v675
    %v677 = vrot.slane %v672, %v676
    %v687 = vunpack.c.l.b16 %v660
    %v688 = vunpack.c.l.b16 %v661
    %v689 = vunpack.c.l.b16 %v662
    %v690 = vunpack.c.l.b16 %v663
    %v691 = vunpack.c.l.b16 %v664
    %v692 = vunpack.c.l.b16 %v665
    %v693 = vunpack.c.l.b16 %v666
    %v694 = vunpack.c.l.b16 %v667
    %v695 = vpack.c.b16 %v688, %v687
    %v696 = vpack.c.b16 %v690, %v689
    %v697 = vpack.c.b16 %v692, %v691
    %v698 = vpack.c.b16 %v694, %v693
    %v703 = vunpack.c.l.b16 %v668
    %v704 = vunpack.c.l.b16 %v669
    %v705 = vunpack.c.l.b16 %v670
    %v706 = vunpack.c.l.b16 %v671
    %v707 = vpack.c.b16 %v704, %v703
    %v708 = vpack.c.b16 %v706, %v705
    %v712 = vsel %vm383, %v695, 0
    %v715 = vsel %vm383, %v696, 0
    %v718 = vsel %vm383, %v697, 0
    %v721 = vsel %vm383, %v698, 0
    %723 = vmatprep.subr.bf16.mxu0 0
    %724 = vmatpush1.bf16.msra.mxu0 0
    %725 = vmatprep.subr.bf16.mxu0 0
    %726 = vmatpush1.bf16.msra.mxu0 0
    %727 = vmatprep.subr.bf16.mxu0 0
    %728 = vmatpush1.bf16.msra.mxu0 0
    %729 = vmatprep.subr.bf16.mxu0 0
    %730 = vmatpush1.bf16.msra.mxu0 0
    %731 = vmatprep.subr.bf16.mxu0 0
    %732 = vmatpush1.bf16.msra.mxu0 0
    %733 = vmatprep.subr.bf16.mxu0 0
    %734 = vmatpush1.bf16.msra.mxu0 0
    %735 = vmatprep.subr.bf16.mxu0 0
    %736 = vmatpush1.bf16.msra.mxu0 %v708
    %737 = vmatprep.subr.bf16.mxu0 0
    %738 = vmatpush1.bf16.msra.mxu0 %v707
    %739 = vmatprep.subr.bf16.mxu0 0
    %740 = vmatpush2.bf16.msra.mxu0 0
    %741 = vmatprep.subr.bf16.mxu0 0
    %742 = vmatpush2.bf16.msra.mxu0 0
    %743 = vmatprep.subr.bf16.mxu0 0
    %744 = vmatpush2.bf16.msra.mxu0 0
    %745 = vmatprep.subr.bf16.mxu0 0
    %746 = vmatpush2.bf16.msra.mxu0 0
    %747 = vmatprep.subr.bf16.mxu0 0
    %748 = vmatpush2.bf16.msra.mxu0 0
    %749 = vmatprep.subr.bf16.mxu0 0
    %750 = vmatpush2.bf16.msra.mxu0 0
    %751 = vmatprep.subr.bf16.mxu0 0
    %752 = vmatpush2.bf16.msra.mxu0 0
    %753 = vmatprep.subr.bf16.mxu0 0
    %754 = vmatpush2.bf16.msra.mxu0 0
    %755 = vmatprep.mubr.bf16.mxu0 0
    %756 = vmatmul.mubr.bf16.gmra.mxu0 %v712
    %v757 = vpop.f32.mrf.mxu0
    %v758 = vadd.f32 %v677, %v757
    %v759 = vpop.f32.mrf.mxu0
    %v760 = vpop.f32.mrf.mxu0
    %v761 = vadd.f32 %v677, %v760
    %v762 = vpop.f32.mrf.mxu0
    %763 = vmatprep.mubr.bf16.mxu0 0
    %764 = vmatmul.mubr.bf16.gmra.mxu0 %v715
    %v765 = vpop.f32.mrf.mxu0
    %v766 = vadd.f32 %v677, %v765
    %v767 = vpop.f32.mrf.mxu0
    %v768 = vpop.f32.mrf.mxu0
    %v769 = vadd.f32 %v677, %v768
    %v770 = vpop.f32.mrf.mxu0
    %771 = vmatprep.mubr.bf16.mxu0 0
    %772 = vmatmul.mubr.bf16.gmra.mxu0 %v718
    %v773 = vpop.f32.mrf.mxu0
    %v774 = vadd.f32 %v677, %v773
    %v775 = vpop.f32.mrf.mxu0
    %v776 = vpop.f32.mrf.mxu0
    %v777 = vadd.f32 %v677, %v776
    %v778 = vpop.f32.mrf.mxu0
    %779 = vmatprep.mubr.bf16.mxu0 0
    %780 = vmatmul.mubr.bf16.gmra.mxu0 %v721
    %v781 = vpop.f32.mrf.mxu0
    %v782 = vadd.f32 %v677, %v781
    %v783 = vpop.f32.mrf.mxu0
    %v784 = vpop.f32.mrf.mxu0
    %v785 = vadd.f32 %v677, %v784
    %v786 = vpop.f32.mrf.mxu0
    %787 = vdwg.mxu0
    %v788 = vmax.f32 %v758, 0.0
    %v789 = vmax.f32 %v761, 0.0
    %v790 = vmax.f32 %v766, 0.0
    %v791 = vmax.f32 %v769, 0.0
    %v792 = vmax.f32 %v774, 0.0
    %v793 = vmax.f32 %v777, 0.0
    %v794 = vmax.f32 %v782, 0.0
    %v795 = vmax.f32 %v785, 0.0
    %v796 = vld [vmem:[#allocation8] sm:$0xff]
    %v798 = vsel %vm322, %v796, 0
    %800 = vmatprep.subr.mxu0 0.0
    %801 = vmatpush1.msra.mxu0 0.0
    %802 = vmatprep.subr.mxu0 0.0
    %803 = vmatpush1.msra.mxu0 0.0
    %804 = vmatprep.subr.mxu0 0.0
    %805 = vmatpush1.msra.mxu0 0.0
    %806 = vmatprep.subr.mxu0 0.0
    %807 = vmatpush1.msra.mxu0 0.0
    %808 = vmatprep.subr.mxu0 0.0
    %809 = vmatpush1.msra.mxu0 0.0
    %810 = vmatprep.subr.mxu0 0.0
    %811 = vmatpush1.msra.mxu0 0.0
    %812 = vmatprep.subr.mxu0 0.0
    %813 = vmatpush1.msra.mxu0 0.0
    %814 = vmatprep.subr.mxu0 0.0
    %815 = vmatpush1.msra.mxu0 0.0
    %816 = vmatprep.subr.mxu0 0.0
    %817 = vmatpush1.msra.mxu0 %v795
    %818 = vmatprep.subr.mxu0 0.0
    %819 = vmatpush1.msra.mxu0 %v794
    %820 = vmatprep.subr.mxu0 0.0
    %821 = vmatpush1.msra.mxu0 %v793
    %822 = vmatprep.subr.mxu0 0.0
    %823 = vmatpush1.msra.mxu0 %v792
    %824 = vmatprep.subr.mxu0 0.0
    %825 = vmatpush1.msra.mxu0 %v791
    %826 = vmatprep.subr.mxu0 0.0
    %827 = vmatpush1.msra.mxu0 %v790
    %828 = vmatprep.subr.mxu0 0.0
    %829 = vmatpush1.msra.mxu0 %v789
    %830 = vmatprep.subr.mxu0 0.0
    %831 = vmatpush1.msra.mxu0 %v788
    %832 = vmatprep.subr.mxu0 0.0
    %833 = vmatpush2.msra.mxu0 0.0
    %834 = vmatprep.subr.mxu0 0.0
    %835 = vmatpush2.msra.mxu0 0.0
    %836 = vmatprep.subr.mxu0 0.0
    %837 = vmatpush2.msra.mxu0 0.0
    %838 = vmatprep.subr.mxu0 0.0
    %839 = vmatpush2.msra.mxu0 0.0
    %840 = vmatprep.subr.mxu0 0.0
    %841 = vmatpush2.msra.mxu0 0.0
    %842 = vmatprep.subr.mxu0 0.0
    %843 = vmatpush2.msra.mxu0 0.0
    %844 = vmatprep.subr.mxu0 0.0
    %845 = vmatpush2.msra.mxu0 0.0
    %846 = vmatprep.subr.mxu0 0.0
    %847 = vmatpush2.msra.mxu0 0.0
    %848 = vmatprep.subr.mxu0 0.0
    %849 = vmatpush2.msra.mxu0 0.0
    %850 = vmatprep.subr.mxu0 0.0
    %851 = vmatpush2.msra.mxu0 0.0
    %852 = vmatprep.subr.mxu0 0.0
    %853 = vmatpush2.msra.mxu0 0.0
    %854 = vmatprep.subr.mxu0 0.0
    %855 = vmatpush2.msra.mxu0 0.0
    %856 = vmatprep.subr.mxu0 0.0
    %857 = vmatpush2.msra.mxu0 0.0
    %858 = vmatprep.subr.mxu0 0.0
    %859 = vmatpush2.msra.mxu0 0.0
    %860 = vmatprep.subr.mxu0 0.0
    %861 = vmatpush2.msra.mxu0 0.0
    %862 = vmatprep.subr.mxu0 0.0
    %863 = vmatpush2.msra.mxu0 0.0
    %864 = vmatprep.mubr.f32.mxu0 0.0
    %865 = vmatmul.mubr.f32.gmra.mxu0 %v798
    %v866 = vpop.f32.mrf.mxu0
    %v867 = vadd.f32 0.0, %v866
    %v868 = vpop.f32.mrf.mxu0
    %869 = vdwg.mxu0
    %v870 = vsel %vm322, %v796, 0.0
    %871 = vadd.xlane.f32.xlu0 %v870
    %v872 = vpop.xlane.xlu0 %871
    %v873 = vmax.f32 %v872, 1e-09
    %v874 = vrcp.pop %v873
    %v875 = vmul.f32 %v867, %v874
    %v876 = vpack.c.bf16 %v454, %v454
    %v877 = vpack.c.bf16 %v657, %v657
    %v878 = vpack.c.bf16 %v875, %v875
    %v879 = vld [vmem:[#allocation13] sm:$0xf]
    %v880 = vld [vmem:[#allocation13 + $0x4] sm:$0xf]
    %v881 = vld [vmem:[#allocation13 + $0x8] sm:$0xf]
    %v882 = vld [vmem:[#allocation13 + $0xc] sm:$0xf]
    %v883 = vld [vmem:[#allocation13 + $0x10] sm:$0xf]
    %v884 = vld [vmem:[#allocation13 + $0x14] sm:$0xf]
    %v885 = vld [vmem:[#allocation13 + $0x18] sm:$0xf]
    %v886 = vld [vmem:[#allocation13 + $0x1c] sm:$0xf]
    %v887 = vld [vmem:[#allocation13 + $0x20] sm:$0xf]
    %v888 = vld [vmem:[#allocation13 + $0x24] sm:$0xf]
    %v889 = vld [vmem:[#allocation13 + $0x28] sm:$0xf]
    %v890 = vld [vmem:[#allocation13 + $0x2c] sm:$0xf]
    %v891 = vld [vmem:[#allocation13 + $0x30] sm:$0xf]
    %v892 = vld [vmem:[#allocation13 + $0x34] sm:$0xf]
    %v893 = vld [vmem:[#allocation13 + $0x38] sm:$0xf]
    %v894 = vld [vmem:[#allocation13 + $0x3c] sm:$0xf]
    %v895 = vld [vmem:[#allocation13 + $0x40] sm:$0xf]
    %v896 = vld [vmem:[#allocation13 + $0x44] sm:$0xf]
    %v897 = vld [vmem:[#allocation13 + $0x48] sm:$0xf]
    %v898 = vld [vmem:[#allocation13 + $0x4c] sm:$0xf]
    %v899 = vld [vmem:[#allocation13 + $0x50] sm:$0xf]
    %v900 = vld [vmem:[#allocation13 + $0x54] sm:$0xf]
    %v901 = vld [vmem:[#allocation13 + $0x58] sm:$0xf]
    %v902 = vld [vmem:[#allocation13 + $0x5c] sm:$0xf]
    %v903 = vld [vmem:[#allocation13 + $0x60] sm:$0xf]
    %v904 = vld [vmem:[#allocation13 + $0x64] sm:$0xf]
    %v905 = vld [vmem:[#allocation13 + $0x68] sm:$0xf]
    %v906 = vld [vmem:[#allocation13 + $0x6c] sm:$0xf]
    %v907 = vld [vmem:[#allocation13 + $0x70] sm:$0xf]
    %v908 = vld [vmem:[#allocation13 + $0x74] sm:$0xf]
    %v909 = vld [vmem:[#allocation13 + $0x78] sm:$0xf]
    %v910 = vld [vmem:[#allocation13 + $0x7c] sm:$0xf]
    %v911 = vld [vmem:[#allocation13 + $0x80] sm:$0xf]
    %v912 = vld [vmem:[#allocation13 + $0x84] sm:$0xf]
    %v913 = vld [vmem:[#allocation13 + $0x88] sm:$0xf]
    %v914 = vld [vmem:[#allocation13 + $0x8c] sm:$0xf]
    %v915 = vld [vmem:[#allocation13 + $0x90] sm:$0xf]
    %v916 = vld [vmem:[#allocation13 + $0x94] sm:$0xf]
    %v917 = vld [vmem:[#allocation13 + $0x98] sm:$0xf]
    %v918 = vld [vmem:[#allocation13 + $0x9c] sm:$0xf]
    %v919 = vld [vmem:[#allocation13 + $0xa0] sm:$0xf]
    %v920 = vld [vmem:[#allocation13 + $0xa4] sm:$0xf]
    %v921 = vld [vmem:[#allocation13 + $0xa8] sm:$0xf]
    %v922 = vld [vmem:[#allocation13 + $0xac] sm:$0xf]
    %v923 = vld [vmem:[#allocation13 + $0xb0] sm:$0xf]
    %v924 = vld [vmem:[#allocation13 + $0xb4] sm:$0xf]
    %v925 = vld [vmem:[#allocation13 + $0xb8] sm:$0xf]
    %v926 = vld [vmem:[#allocation13 + $0xbc] sm:$0xf]
    %v927 = vld [vmem:[%s13] sm:$0x1]
    %v929 = vlaneseq
    %v930 = vshrl.u32 %v929, 7
    %v931 = vsub.s32 0, %v930
    %v932 = vrot.slane %v927, %v931
    %v982 = vunpack.c.l.b16 %v879
    %v983 = vunpack.c.l.b16 %v880
    %v984 = vunpack.c.l.b16 %v881
    %v985 = vunpack.c.l.b16 %v882
    %v986 = vunpack.c.l.b16 %v883
    %v987 = vunpack.c.l.b16 %v884
    %v988 = vunpack.c.l.b16 %v885
    %v989 = vunpack.c.l.b16 %v886
    %v990 = vunpack.c.l.b16 %v887
    %v991 = vunpack.c.l.b16 %v888
    %v992 = vunpack.c.l.b16 %v889
    %v993 = vunpack.c.l.b16 %v890
    %v994 = vunpack.c.l.b16 %v891
    %v995 = vunpack.c.l.b16 %v892
    %v996 = vunpack.c.l.b16 %v893
    %v997 = vunpack.c.l.b16 %v894
    %v998 = vunpack.c.l.b16 %v895
    %v999 = vunpack.c.l.b16 %v896
    %v1000 = vunpack.c.l.b16 %v897
    %v1001 = vunpack.c.l.b16 %v898
    %v1002 = vunpack.c.l.b16 %v899
    %v1003 = vunpack.c.l.b16 %v900
    %v1004 = vunpack.c.l.b16 %v901
    %v1005 = vunpack.c.l.b16 %v902
    %v1006 = vunpack.c.l.b16 %v903
    %v1007 = vunpack.c.l.b16 %v904
    %v1008 = vunpack.c.l.b16 %v905
    %v1009 = vunpack.c.l.b16 %v906
    %v1010 = vunpack.c.l.b16 %v907
    %v1011 = vunpack.c.l.b16 %v908
    %v1012 = vunpack.c.l.b16 %v909
    %v1013 = vunpack.c.l.b16 %v910
    %v1014 = vunpack.c.l.b16 %v911
    %v1015 = vunpack.c.l.b16 %v912
    %v1016 = vunpack.c.l.b16 %v913
    %v1017 = vunpack.c.l.b16 %v914
    %v1018 = vunpack.c.l.b16 %v915
    %v1019 = vunpack.c.l.b16 %v916
    %v1020 = vunpack.c.l.b16 %v917
    %v1021 = vunpack.c.l.b16 %v918
    %v1022 = vunpack.c.l.b16 %v919
    %v1023 = vunpack.c.l.b16 %v920
    %v1024 = vunpack.c.l.b16 %v921
    %v1025 = vunpack.c.l.b16 %v922
    %v1026 = vunpack.c.l.b16 %v923
    %v1027 = vunpack.c.l.b16 %v924
    %v1028 = vunpack.c.l.b16 %v925
    %v1029 = vunpack.c.l.b16 %v926
    %v1030 = vpack.c.b16 %v983, %v982
    %v1031 = vpack.c.b16 %v985, %v984
    %v1032 = vpack.c.b16 %v987, %v986
    %v1033 = vpack.c.b16 %v989, %v988
    %v1034 = vpack.c.b16 %v991, %v990
    %v1035 = vpack.c.b16 %v993, %v992
    %v1036 = vpack.c.b16 %v995, %v994
    %v1037 = vpack.c.b16 %v997, %v996
    %v1038 = vpack.c.b16 %v999, %v998
    %v1039 = vpack.c.b16 %v1001, %v1000
    %v1040 = vpack.c.b16 %v1003, %v1002
    %v1041 = vpack.c.b16 %v1005, %v1004
    %v1042 = vpack.c.b16 %v1007, %v1006
    %v1043 = vpack.c.b16 %v1009, %v1008
    %v1044 = vpack.c.b16 %v1011, %v1010
    %v1045 = vpack.c.b16 %v1013, %v1012
    %v1046 = vpack.c.b16 %v1015, %v1014
    %v1047 = vpack.c.b16 %v1017, %v1016
    %v1048 = vpack.c.b16 %v1019, %v1018
    %v1049 = vpack.c.b16 %v1021, %v1020
    %v1050 = vpack.c.b16 %v1023, %v1022
    %v1051 = vpack.c.b16 %v1025, %v1024
    %v1052 = vpack.c.b16 %v1027, %v1026
    %v1053 = vpack.c.b16 %v1029, %v1028
    %1078 = vmatprep.subr.bf16.mxu0 0
    %1079 = vmatpush1.bf16.msra.mxu0 %v1037
    %1080 = vmatprep.subr.bf16.mxu0 0
    %1081 = vmatpush1.bf16.msra.mxu0 %v1036
    %1082 = vmatprep.subr.bf16.mxu0 0
    %1083 = vmatpush1.bf16.msra.mxu0 %v1035
    %1084 = vmatprep.subr.bf16.mxu0 0
    %1085 = vmatpush1.bf16.msra.mxu0 %v1034
    %1086 = vmatprep.subr.bf16.mxu0 0
    %1087 = vmatpush1.bf16.msra.mxu0 %v1033
    %1088 = vmatprep.subr.bf16.mxu0 0
    %1089 = vmatpush1.bf16.msra.mxu0 %v1032
    %1090 = vmatprep.subr.bf16.mxu0 0
    %1091 = vmatpush1.bf16.msra.mxu0 %v1031
    %1092 = vmatprep.subr.bf16.mxu0 0
    %1093 = vmatpush1.bf16.msra.mxu0 %v1030
    %1094 = vmatprep.subr.bf16.mxu0 0
    %1095 = vmatpush2.bf16.msra.mxu0 %v1045
    %1096 = vmatprep.subr.bf16.mxu0 0
    %1097 = vmatpush2.bf16.msra.mxu0 %v1044
    %1098 = vmatprep.subr.bf16.mxu0 0
    %1099 = vmatpush2.bf16.msra.mxu0 %v1043
    %1100 = vmatprep.subr.bf16.mxu0 0
    %1101 = vmatpush2.bf16.msra.mxu0 %v1042
    %1102 = vmatprep.subr.bf16.mxu0 0
    %1103 = vmatpush2.bf16.msra.mxu0 %v1041
    %1104 = vmatprep.subr.bf16.mxu0 0
    %1105 = vmatpush2.bf16.msra.mxu0 %v1040
    %1106 = vmatprep.subr.bf16.mxu0 0
    %1107 = vmatpush2.bf16.msra.mxu0 %v1039
    %1108 = vmatprep.subr.bf16.mxu0 0
    %1109 = vmatpush2.bf16.msra.mxu0 %v1038
    %1110 = vmatprep.mubr.bf16.mxu0 %v877
    %1111 = vmatmul.mubr.bf16.gmra.mxu0 %v876
    %v1112 = vpop.f32.mrf.mxu0
    %v1113 = vadd.f32 %v932, %v1112
    %v1114 = vpop.f32.mrf.mxu0
    %v1115 = vpop.f32.mrf.mxu0
    %v1116 = vpop.f32.mrf.mxu0
    %1117 = vdwg.mxu0
    %1118 = vmatprep.subr.bf16.mxu0 0
    %1119 = vmatpush1.bf16.msra.mxu0 %v1053
    %1120 = vmatprep.subr.bf16.mxu0 0
    %1121 = vmatpush1.bf16.msra.mxu0 %v1052
    %1122 = vmatprep.subr.bf16.mxu0 0
    %1123 = vmatpush1.bf16.msra.mxu0 %v1051
    %1124 = vmatprep.subr.bf16.mxu0 0
    %1125 = vmatpush1.bf16.msra.mxu0 %v1050
    %1126 = vmatprep.subr.bf16.mxu0 0
    %1127 = vmatpush1.bf16.msra.mxu0 %v1049
    %1128 = vmatprep.subr.bf16.mxu0 0
    %1129 = vmatpush1.bf16.msra.mxu0 %v1048
    %1130 = vmatprep.subr.bf16.mxu0 0
    %1131 = vmatpush1.bf16.msra.mxu0 %v1047
    %1132 = vmatprep.subr.bf16.mxu0 0
    %1133 = vmatpush1.bf16.msra.mxu0 %v1046
    %1134 = vmatprep.subr.bf16.mxu0 0
    %1135 = vmatpush2.bf16.msra.mxu0 0
    %1136 = vmatprep.subr.bf16.mxu0 0
    %1137 = vmatpush2.bf16.msra.mxu0 0
    %1138 = vmatprep.subr.bf16.mxu0 0
    %1139 = vmatpush2.bf16.msra.mxu0 0
    %1140 = vmatprep.subr.bf16.mxu0 0
    %1141 = vmatpush2.bf16.msra.mxu0 0
    %1142 = vmatprep.subr.bf16.mxu0 0
    %1143 = vmatpush2.bf16.msra.mxu0 0
    %1144 = vmatprep.subr.bf16.mxu0 0
    %1145 = vmatpush2.bf16.msra.mxu0 0
    %1146 = vmatprep.subr.bf16.mxu0 0
    %1147 = vmatpush2.bf16.msra.mxu0 0
    %1148 = vmatprep.subr.bf16.mxu0 0
    %1149 = vmatpush2.bf16.msra.mxu0 0
    %1150 = vmatprep.mubr.bf16.mxu0 0
    %1151 = vmatmul.mubr.bf16.gmra.mxu0 %v878
    %v1152 = vpop.f32.mrf.mxu0
    %v1153 = vadd.f32 %v1113, %v1152
    %v1154 = vpop.f32.mrf.mxu0
    %v1155 = vpop.f32.mrf.mxu0
    %v1156 = vpop.f32.mrf.mxu0
    %1157 = vdwg.mxu0
    %1158 = vmax.xlane.f32.xlu0 %v1153
    %v1159 = vpop.xlane.xlu0 %1158
    %v1160 = vsub.f32 %v1153, %v1159
    %v1161 = vmul.f32 %v1160, 1.442695
    %v1162 = vpow.pop %v1161
    %1163 = vadd.xlane.f32.xlu0 %v1162
    %v1164 = vpop.xlane.xlu0 %1163
    %v1165 = vrcp.pop %v1164
    %v1166 = vmul.f32 %v1162, %v1165
    %1168 = vset.pattern.permute.xlu0 0
    %1169 = vperm.xlu0 %1168, %v1166
    %v1170 = vpop.permute.xlu0 %1169
    %v1172 = vmul.f32 %v1170, %v454
    %1173 = vset.pattern.permute.xlu0 1
    %1174 = vperm.xlu0 %1173, %v1166
    %v1175 = vpop.permute.xlu0 %1174
    %v1177 = vmul.f32 %v1175, %v657
    %v1178 = vadd.f32 %v1172, %v1177
    %1179 = vset.pattern.permute.xlu0 2
    %1180 = vperm.xlu0 %1179, %v1166
    %v1181 = vpop.permute.xlu0 %1180
    %v1183 = vmul.f32 %v1181, %v875
    %v1184 = vadd.f32 %v1178, %v1183
    %v1185 = vpack.c.bf16 %v1184, %v1184
    %v1186 = vld [vmem:[#allocation14] sm:$0xf]
    %v1187 = vld [vmem:[#allocation14 + $0x4] sm:$0xf]
    %v1188 = vld [vmem:[#allocation14 + $0x8] sm:$0xf]
    %v1189 = vld [vmem:[#allocation14 + $0xc] sm:$0xf]
    %v1190 = vld [vmem:[#allocation14 + $0x10] sm:$0xf]
    %v1191 = vld [vmem:[#allocation14 + $0x14] sm:$0xf]
    %v1192 = vld [vmem:[#allocation14 + $0x18] sm:$0xf]
    %v1193 = vld [vmem:[#allocation14 + $0x1c] sm:$0xf]
    %v1194 = vld [vmem:[#allocation14 + $0x20] sm:$0xf]
    %v1195 = vld [vmem:[#allocation14 + $0x24] sm:$0xf]
    %v1196 = vld [vmem:[#allocation14 + $0x28] sm:$0xf]
    %v1197 = vld [vmem:[#allocation14 + $0x2c] sm:$0xf]
    %v1198 = vld [vmem:[#allocation14 + $0x30] sm:$0xf]
    %v1199 = vld [vmem:[#allocation14 + $0x34] sm:$0xf]
    %v1200 = vld [vmem:[#allocation14 + $0x38] sm:$0xf]
    %v1201 = vld [vmem:[#allocation14 + $0x3c] sm:$0xf]
    %v1202 = vld [vmem:[%s15] sm:$0x1]
    %v1204 = vlaneseq
    %v1205 = vshrl.u32 %v1204, 7
    %v1206 = vsub.s32 0, %v1205
    %v1207 = vrot.slane %v1202, %v1206
    %v1225 = vunpack.c.l.b16 %v1186
    %v1226 = vunpack.c.l.b16 %v1187
    %v1227 = vunpack.c.l.b16 %v1188
    %v1228 = vunpack.c.l.b16 %v1189
    %v1229 = vunpack.c.l.b16 %v1190
    %v1230 = vunpack.c.l.b16 %v1191
    %v1231 = vunpack.c.l.b16 %v1192
    %v1232 = vunpack.c.l.b16 %v1193
    %v1233 = vunpack.c.l.b16 %v1194
    %v1234 = vunpack.c.l.b16 %v1195
    %v1235 = vunpack.c.l.b16 %v1196
    %v1236 = vunpack.c.l.b16 %v1197
    %v1237 = vunpack.c.l.b16 %v1198
    %v1238 = vunpack.c.l.b16 %v1199
    %v1239 = vunpack.c.l.b16 %v1200
    %v1240 = vunpack.c.l.b16 %v1201
    %v1241 = vpack.c.b16 %v1226, %v1225
    %v1242 = vpack.c.b16 %v1228, %v1227
    %v1243 = vpack.c.b16 %v1230, %v1229
    %v1244 = vpack.c.b16 %v1232, %v1231
    %v1245 = vpack.c.b16 %v1234, %v1233
    %v1246 = vpack.c.b16 %v1236, %v1235
    %v1247 = vpack.c.b16 %v1238, %v1237
    %v1248 = vpack.c.b16 %v1240, %v1239
    %1257 = vmatprep.subr.bf16.mxu0 0
    %1258 = vmatpush1.bf16.msra.mxu0 %v1248
    %1259 = vmatprep.subr.bf16.mxu0 0
    %1260 = vmatpush1.bf16.msra.mxu0 %v1247
    %1261 = vmatprep.subr.bf16.mxu0 0
    %1262 = vmatpush1.bf16.msra.mxu0 %v1246
    %1263 = vmatprep.subr.bf16.mxu0 0
    %1264 = vmatpush1.bf16.msra.mxu0 %v1245
    %1265 = vmatprep.subr.bf16.mxu0 0
    %1266 = vmatpush1.bf16.msra.mxu0 %v1244
    %1267 = vmatprep.subr.bf16.mxu0 0
    %1268 = vmatpush1.bf16.msra.mxu0 %v1243
    %1269 = vmatprep.subr.bf16.mxu0 0
    %1270 = vmatpush1.bf16.msra.mxu0 %v1242
    %1271 = vmatprep.subr.bf16.mxu0 0
    %1272 = vmatpush1.bf16.msra.mxu0 %v1241
    %1273 = vmatprep.subr.bf16.mxu0 0
    %1274 = vmatpush2.bf16.msra.mxu0 0
    %1275 = vmatprep.subr.bf16.mxu0 0
    %1276 = vmatpush2.bf16.msra.mxu0 0
    %1277 = vmatprep.subr.bf16.mxu0 0
    %1278 = vmatpush2.bf16.msra.mxu0 0
    %1279 = vmatprep.subr.bf16.mxu0 0
    %1280 = vmatpush2.bf16.msra.mxu0 0
    %1281 = vmatprep.subr.bf16.mxu0 0
    %1282 = vmatpush2.bf16.msra.mxu0 0
    %1283 = vmatprep.subr.bf16.mxu0 0
    %1284 = vmatpush2.bf16.msra.mxu0 0
    %1285 = vmatprep.subr.bf16.mxu0 0
    %1286 = vmatpush2.bf16.msra.mxu0 0
    %1287 = vmatprep.subr.bf16.mxu0 0
    %1288 = vmatpush2.bf16.msra.mxu0 0
    %1289 = vmatprep.mubr.bf16.mxu0 0
    %1290 = vmatmul.mubr.bf16.gmra.mxu0 %v1185
    %v1291 = vpop.f32.mrf.mxu0
    %v1292 = vadd.f32 %v1207, %v1291
    %v1293 = vpop.f32.mrf.mxu0
    %v1294 = vpop.f32.mrf.mxu0
    %v1295 = vpop.f32.mrf.mxu0
    %1296 = vdwg.mxu0
    %v1297 = vmax.f32 %v1292, 0.0
    %v1298 = vpack.c.bf16 %v1297, %v1297
    %v1299 = vld [vmem:[#allocation16] sm:$0xf]
    %v1300 = vld [vmem:[#allocation16 + $0x4] sm:$0xf]
    %v1301 = vld [vmem:[#allocation16 + $0x8] sm:$0xf]
    %v1302 = vld [vmem:[#allocation16 + $0xc] sm:$0xf]
    %v1303 = vld [vmem:[#allocation16 + $0x10] sm:$0xf]
    %v1304 = vld [vmem:[#allocation16 + $0x14] sm:$0xf]
    %v1305 = vld [vmem:[#allocation16 + $0x18] sm:$0xf]
    %v1306 = vld [vmem:[#allocation16 + $0x1c] sm:$0xf]
    %v1307 = vld [vmem:[#allocation16 + $0x20] sm:$0xf]
    %v1308 = vld [vmem:[#allocation16 + $0x24] sm:$0xf]
    %v1309 = vld [vmem:[#allocation16 + $0x28] sm:$0xf]
    %v1310 = vld [vmem:[#allocation16 + $0x2c] sm:$0xf]
    %v1311 = vld [vmem:[#allocation16 + $0x30] sm:$0xf]
    %v1312 = vld [vmem:[#allocation16 + $0x34] sm:$0xf]
    %v1313 = vld [vmem:[#allocation16 + $0x38] sm:$0xf]
    %v1314 = vld [vmem:[#allocation16 + $0x3c] sm:$0xf]
    %v1315 = vld [vmem:[%s17] sm:$0x1]
    %v1317 = vlaneseq
    %v1318 = vshrl.u32 %v1317, 7
    %v1319 = vsub.s32 0, %v1318
    %v1320 = vrot.slane %v1315, %v1319
    %v1338 = vunpack.c.l.b16 %v1299
    %v1339 = vunpack.c.l.b16 %v1300
    %v1340 = vunpack.c.l.b16 %v1301
    %v1341 = vunpack.c.l.b16 %v1302
    %v1342 = vunpack.c.l.b16 %v1303
    %v1343 = vunpack.c.l.b16 %v1304
    %v1344 = vunpack.c.l.b16 %v1305
    %v1345 = vunpack.c.l.b16 %v1306
    %v1346 = vunpack.c.l.b16 %v1307
    %v1347 = vunpack.c.l.b16 %v1308
    %v1348 = vunpack.c.l.b16 %v1309
    %v1349 = vunpack.c.l.b16 %v1310
    %v1350 = vunpack.c.l.b16 %v1311
    %v1351 = vunpack.c.l.b16 %v1312
    %v1352 = vunpack.c.l.b16 %v1313
    %v1353 = vunpack.c.l.b16 %v1314
    %v1354 = vpack.c.b16 %v1339, %v1338
    %v1355 = vpack.c.b16 %v1341, %v1340
    %v1356 = vpack.c.b16 %v1343, %v1342
    %v1357 = vpack.c.b16 %v1345, %v1344
    %v1358 = vpack.c.b16 %v1347, %v1346
    %v1359 = vpack.c.b16 %v1349, %v1348
    %v1360 = vpack.c.b16 %v1351, %v1350
    %v1361 = vpack.c.b16 %v1353, %v1352
    %1370 = vmatprep.subr.bf16.mxu0 0
    %1371 = vmatpush1.bf16.msra.mxu0 %v1361
    %1372 = vmatprep.subr.bf16.mxu0 0
    %1373 = vmatpush1.bf16.msra.mxu0 %v1360
    %1374 = vmatprep.subr.bf16.mxu0 0
    %1375 = vmatpush1.bf16.msra.mxu0 %v1359
    %1376 = vmatprep.subr.bf16.mxu0 0
    %1377 = vmatpush1.bf16.msra.mxu0 %v1358
    %1378 = vmatprep.subr.bf16.mxu0 0
    %1379 = vmatpush1.bf16.msra.mxu0 %v1357
    %1380 = vmatprep.subr.bf16.mxu0 0
    %1381 = vmatpush1.bf16.msra.mxu0 %v1356
    %1382 = vmatprep.subr.bf16.mxu0 0
    %1383 = vmatpush1.bf16.msra.mxu0 %v1355
    %1384 = vmatprep.subr.bf16.mxu0 0
    %1385 = vmatpush1.bf16.msra.mxu0 %v1354
    %1386 = vmatprep.subr.bf16.mxu0 0
    %1387 = vmatpush2.bf16.msra.mxu0 0
    %1388 = vmatprep.subr.bf16.mxu0 0
    %1389 = vmatpush2.bf16.msra.mxu0 0
    %1390 = vmatprep.subr.bf16.mxu0 0
    %1391 = vmatpush2.bf16.msra.mxu0 0
    %1392 = vmatprep.subr.bf16.mxu0 0
    %1393 = vmatpush2.bf16.msra.mxu0 0
    %1394 = vmatprep.subr.bf16.mxu0 0
    %1395 = vmatpush2.bf16.msra.mxu0 0
    %1396 = vmatprep.subr.bf16.mxu0 0
    %1397 = vmatpush2.bf16.msra.mxu0 0
    %1398 = vmatprep.subr.bf16.mxu0 0
    %1399 = vmatpush2.bf16.msra.mxu0 0
    %1400 = vmatprep.subr.bf16.mxu0 0
    %1401 = vmatpush2.bf16.msra.mxu0 0
    %1402 = vmatprep.mubr.bf16.mxu0 0
    %1403 = vmatmul.mubr.bf16.gmra.mxu0 %v1298
    %v1404 = vpop.f32.mrf.mxu0
    %v1405 = vadd.f32 %v1320, %v1404
    %v1406 = vpop.f32.mrf.mxu0
    %v1407 = vpop.f32.mrf.mxu0
    %v1408 = vpop.f32.mrf.mxu0
    %1409 = vdwg.mxu0
    %v1410 = vmax.f32 %v1405, 0.0
    %v1411 = vpack.c.bf16 %v1410, %v1410
    %v1412 = vld [vmem:[#allocation17] sm:$0xf]
    %v1413 = vld [vmem:[#allocation17 + $0x4] sm:$0xf]
    %v1414 = vld [vmem:[#allocation17 + $0x8] sm:$0xf]
    %v1415 = vld [vmem:[#allocation17 + $0xc] sm:$0xf]
    %v1416 = vld [vmem:[#allocation17 + $0x10] sm:$0xf]
    %v1417 = vld [vmem:[#allocation17 + $0x14] sm:$0xf]
    %v1418 = vld [vmem:[#allocation17 + $0x18] sm:$0xf]
    %v1419 = vld [vmem:[#allocation17 + $0x1c] sm:$0xf]
    %v1420 = vld [vmem:[#allocation17 + $0x20] sm:$0xf]
    %v1421 = vld [vmem:[#allocation17 + $0x24] sm:$0xf]
    %v1422 = vld [vmem:[#allocation17 + $0x28] sm:$0xf]
    %v1423 = vld [vmem:[#allocation17 + $0x2c] sm:$0xf]
    %v1424 = vld [vmem:[#allocation17 + $0x30] sm:$0xf]
    %v1425 = vld [vmem:[#allocation17 + $0x34] sm:$0xf]
    %v1426 = vld [vmem:[#allocation17 + $0x38] sm:$0xf]
    %v1427 = vld [vmem:[#allocation17 + $0x3c] sm:$0xf]
    %v1428 = vld [vmem:[%s19] sm:$0x1]
    %v1430 = vlaneseq
    %v1431 = vshrl.u32 %v1430, 7
    %v1432 = vsub.s32 0, %v1431
    %v1433 = vrot.slane %v1428, %v1432
    %v1451 = vunpack.c.l.b16 %v1412
    %v1452 = vunpack.c.l.b16 %v1413
    %v1453 = vunpack.c.l.b16 %v1414
    %v1454 = vunpack.c.l.b16 %v1415
    %v1455 = vunpack.c.l.b16 %v1416
    %v1456 = vunpack.c.l.b16 %v1417
    %v1457 = vunpack.c.l.b16 %v1418
    %v1458 = vunpack.c.l.b16 %v1419
    %v1459 = vunpack.c.l.b16 %v1420
    %v1460 = vunpack.c.l.b16 %v1421
    %v1461 = vunpack.c.l.b16 %v1422
    %v1462 = vunpack.c.l.b16 %v1423
    %v1463 = vunpack.c.l.b16 %v1424
    %v1464 = vunpack.c.l.b16 %v1425
    %v1465 = vunpack.c.l.b16 %v1426
    %v1466 = vunpack.c.l.b16 %v1427
    %v1467 = vpack.c.b16 %v1452, %v1451
    %v1468 = vpack.c.b16 %v1454, %v1453
    %v1469 = vpack.c.b16 %v1456, %v1455
    %v1470 = vpack.c.b16 %v1458, %v1457
    %v1471 = vpack.c.b16 %v1460, %v1459
    %v1472 = vpack.c.b16 %v1462, %v1461
    %v1473 = vpack.c.b16 %v1464, %v1463
    %v1474 = vpack.c.b16 %v1466, %v1465
    %1483 = vmatprep.subr.bf16.mxu0 0
    %1484 = vmatpush1.bf16.msra.mxu0 %v1474
    %1485 = vmatprep.subr.bf16.mxu0 0
    %1486 = vmatpush1.bf16.msra.mxu0 %v1473
    %1487 = vmatprep.subr.bf16.mxu0 0
    %1488 = vmatpush1.bf16.msra.mxu0 %v1472
    %1489 = vmatprep.subr.bf16.mxu0 0
    %1490 = vmatpush1.bf16.msra.mxu0 %v1471
    %1491 = vmatprep.subr.bf16.mxu0 0
    %1492 = vmatpush1.bf16.msra.mxu0 %v1470
    %1493 = vmatprep.subr.bf16.mxu0 0
    %1494 = vmatpush1.bf16.msra.mxu0 %v1469
    %1495 = vmatprep.subr.bf16.mxu0 0
    %1496 = vmatpush1.bf16.msra.mxu0 %v1468
    %1497 = vmatprep.subr.bf16.mxu0 0
    %1498 = vmatpush1.bf16.msra.mxu0 %v1467
    %1499 = vmatprep.subr.bf16.mxu0 0
    %1500 = vmatpush2.bf16.msra.mxu0 0
    %1501 = vmatprep.subr.bf16.mxu0 0
    %1502 = vmatpush2.bf16.msra.mxu0 0
    %1503 = vmatprep.subr.bf16.mxu0 0
    %1504 = vmatpush2.bf16.msra.mxu0 0
    %1505 = vmatprep.subr.bf16.mxu0 0
    %1506 = vmatpush2.bf16.msra.mxu0 0
    %1507 = vmatprep.subr.bf16.mxu0 0
    %1508 = vmatpush2.bf16.msra.mxu0 0
    %1509 = vmatprep.subr.bf16.mxu0 0
    %1510 = vmatpush2.bf16.msra.mxu0 0
    %1511 = vmatprep.subr.bf16.mxu0 0
    %1512 = vmatpush2.bf16.msra.mxu0 0
    %1513 = vmatprep.subr.bf16.mxu0 0
    %1514 = vmatpush2.bf16.msra.mxu0 0
    %1515 = vmatprep.mubr.bf16.mxu0 0
    %1516 = vmatmul.mubr.bf16.gmra.mxu0 %v1411
    %v1517 = vpop.f32.mrf.mxu0
    %v1518 = vadd.f32 %v1433, %v1517
    %v1519 = vpop.f32.mrf.mxu0
    %v1520 = vpop.f32.mrf.mxu0
    %v1521 = vpop.f32.mrf.mxu0
    %1522 = vdwg.mxu0
    %1523 = vst [vmem:[#allocation19] sm:$0xff] %v1518
    %1524 = vst [vmem:[#allocation19 + $0x8] sm:$0xff] %v1166
    // Predicated region
    $region122: #{tpu_custom_call.1} parent=1 // pred_check
      _
    $region123: #{tpu_custom_call.1} parent=1 // pred_check_branch
      %1526 = sbr.rel (0) target = $region125
    $region124: #{tpu_custom_call.1} parent=1 // pred_region
      %s1528 = ssub.s32 256, 256
      %1529 = vsyncadd [#allocation4], %s1528
      %s1531 = sshll.u32 [#allocation19], 4
      %s1532 = int_to_ptr.vmem [resolvable:$true] %s1531
      %1534 = dma.vmem_to_hbm [thread:$0]  %s1532, 256, %s20, [#allocation4]
    $region125: #{tpu_custom_call.1} parent=1 // pred_fallthru
      _
    // Predicated region
    $region126: #{tpu_custom_call.1} parent=1 // pred_check
      _
    $region127: #{tpu_custom_call.1} parent=1 // pred_check_branch
      %1536 = sbr.rel (0) target = $region129
    $region128: #{tpu_custom_call.1} parent=1 // pred_region
      %1537 = dma.done [#allocation4], 256
    $region129: #{tpu_custom_call.1} parent=1 // pred_fallthru
      _
    %1538 = vsyncpa [#allocation3], 1
    %1539 = vsyncpa [#allocation6], 1
    %1540 = vsyncpa [#allocation9], 1
    %1541 = vsyncpa [#allocation12], 1
    %1542 = vsyncpa [#allocation15], 1
    %1543 = vsyncpa [#allocation18], 1
    %1544 = vsyncpa [#allocation4], 1

</llo_original>
